<compile_context>
chip_gen: v5e
topology: v5e:2x2
jax: 0.10.0
libtpu: 0.0.40
codegen_flags: <defaults>
</compile_context>

<pallas_src>
from math import sqrt

import jax
import jax.numpy as jnp
from jax import lax
from jax.experimental import pallas as pl
from jax.experimental.pallas import tpu as pltpu

Z_DIM = 256
W_DIM = 256
N_LAYERS = 8


def _mapping_network_kernel(x_ref, w_ref, b_ref, o_ref):
    # x_ref: (TB, Z_DIM) f32                      activation tile (pipelined)
    # w_ref: (N_LAYERS, Z_DIM, W_DIM) bf16        c-scaled, pre-transposed (resident)
    # b_ref: (N_LAYERS, 1, W_DIM) f32             biases (resident)
    x = x_ref[...]

    # Pixel norm over the feature axis (PyTorch dim=1 on [B, Z_DIM]); stays f32.
    h = x * lax.rsqrt(jnp.mean(x * x, axis=-1, keepdims=True) + 1e-8)

    # 8 equalized-linear layers, statically unrolled; activation stays on-chip.
    for l in range(N_LAYERS):
        w = w_ref[l]                             # (Z_DIM, W_DIM) bf16
        # bf16 MXU operands, f32 accumulation; bias-add / ReLU kept in f32.
        h = jnp.dot(h.astype(jnp.bfloat16), w,
                    preferred_element_type=jnp.float32) + b_ref[l]
        if l < N_LAYERS - 1:
            h = jnp.maximum(h, 0.0)              # ReLU between layers, not after last

    o_ref[...] = h.astype(o_ref.dtype)


def mapping_network(x, weights, biases, *, block_batch=512):
    """Fused StyleGAN mapping network: pixel-norm + 8x EqualizedLinear (+ReLU).

    x:       [batch, Z_DIM]
    weights: [N_LAYERS, W_DIM, Z_DIM]  (raw, un-scaled; c folded in here)
    biases:  [N_LAYERS, W_DIM]
    """
    batch, in_dim = x.shape
    n_layers, out_dim, in_dim_w = weights.shape
    assert in_dim == in_dim_w and n_layers == N_LAYERS
    assert in_dim % 128 == 0 and out_dim % 128 == 0, "feature dims must be lane-dense"

    # Fold the equalized-LR constant, pre-transpose to [L, in, out] (canonical MXU
    # contraction inside the kernel) and cast MXU operands to bf16 -- one cheap
    # fused XLA op on a 2 MiB tensor, done once outside the kernel.
    c = 1.0 / sqrt(in_dim)
    w_bf16 = jnp.transpose(weights * c, (0, 2, 1)).astype(jnp.bfloat16)
    b3 = biases.reshape(n_layers, 1, out_dim).astype(jnp.float32)

    # Batch tile: sublane multiple, capped by block_batch, and no bigger than
    # ~half the batch so the parallel grid axis has >= 2 steps (v7x megacore).
    half = ((pl.cdiv(batch, 2) + 7) // 8) * 8
    tb = max(8, min(block_batch, half))
    grid = pl.cdiv(batch, tb)        # ragged last block handled by Pallas clipping

    cost = pl.CostEstimate(
        flops=2 * batch * in_dim * out_dim * n_layers,
        transcendentals=batch,                                   # one rsqrt per row
        bytes_accessed=(x.size + batch * out_dim) * 4 + w_bf16.size * 2 + b3.size * 4,
    )

    out = pl.pallas_call(
        _mapping_network_kernel,
        out_shape=jax.ShapeDtypeStruct((batch, out_dim), x.dtype),
        grid_spec=pltpu.PrefetchScalarGridSpec(
            num_scalar_prefetch=0,
            grid=(grid,),
            in_specs=[
                pl.BlockSpec((tb, in_dim), lambda i: (i, 0)),
                pl.BlockSpec((n_layers, in_dim, out_dim), lambda i: (0, 0, 0)),
                pl.BlockSpec((n_layers, 1, out_dim), lambda i: (0, 0, 0)),
            ],
            out_specs=pl.BlockSpec((tb, out_dim), lambda i: (i, 0)),
        ),
        compiler_params=pltpu.CompilerParams(
            dimension_semantics=("parallel",),
        ),
        cost_estimate=cost,
    )(x.astype(jnp.float32), w_bf16, b3)

    return out


if __name__ == "__main__":
    key = jax.random.PRNGKey(0)
    kx, kw = jax.random.split(key)

    batch = 8

    # Deterministic parameter init mirroring the PyTorch module:
    #   weight_l ~ N(0, 1) of shape [W_DIM, Z_DIM];  bias_l = 0.
    x = jax.random.normal(kx, (batch, Z_DIM), dtype=jnp.float32)
    weights = jax.random.normal(kw, (N_LAYERS, W_DIM, Z_DIM), dtype=jnp.float32)
    biases = jnp.zeros((N_LAYERS, W_DIM), dtype=jnp.float32)

    y = mapping_network(x, weights, biases)
    jax.block_until_ready(y)

    # Plain-JAX f32 reference of the PyTorch forward (exact module math).
    c = 1.0 / sqrt(Z_DIM)
    h = x / jnp.sqrt(jnp.mean(x * x, axis=1, keepdims=True) + 1e-8)
    for l in range(N_LAYERS):
        h = h @ (weights[l] * c).T + biases[l]
        if l < N_LAYERS - 1:
            h = jnp.maximum(h, 0.0)

    assert y.shape == (batch, W_DIM)
    # bf16 MXU operands drift slightly vs the pure-f32 reference over 8 layers.
    assert jnp.allclose(y, h, atol=3e-2, rtol=5e-2), "mismatch vs reference"

    print("KERNEL_OK")
</pallas_src>

<mosaic_0001>
module attributes {stable_mosaic.version = 11 : i64} {
  func.func @_mapping_network_kernel(%arg0: i32, %arg1: memref<8x256xf32, #tpu.memory_space<vmem>>, %arg2: memref<8x256x256xbf16, #tpu.memory_space<vmem>>, %arg3: memref<8x1x256xf32, #tpu.memory_space<vmem>>, %arg4: memref<8x256xf32, #tpu.memory_space<vmem>>) attributes {dimension_semantics = [#tpu.dimension_semantics<parallel>], iteration_bounds = array<i64: 1>, scalar_prefetch = 0 : i64, scratch_operands = 0 : i64, tpu.core_type = #tpu.core_type<tc>, window_params = [{transform_indices = @transform_0, window_bounds = array<i64: 8, 256>}, {pipeline_mode = #tpu.pipeline_mode<synchronous>, transform_indices = @transform_1, window_bounds = array<i64: 8, 256, 256>}, {pipeline_mode = #tpu.pipeline_mode<synchronous>, transform_indices = @transform_2, window_bounds = array<i64: 8, 1, 256>}, {transform_indices = @transform_3, window_bounds = array<i64: 8, 256>}]} {
    %c0 = arith.constant 0 : index
    %c0_0 = arith.constant 0 : index
    %0 = vector.load %arg1[%c0, %c0_0] : memref<8x256xf32, #tpu.memory_space<vmem>>, vector<8x256xf32>
    %1 = arith.mulf %0, %0 : vector<8x256xf32>
    %cst = arith.constant dense<0.000000e+00> : vector<8xf32>
    %2 = vector.multi_reduction <add>, %1, %cst [1] : vector<8x256xf32> to vector<8xf32>
    %3 = vector.shape_cast %2 : vector<8xf32> to vector<8x1xf32>
    %cst_1 = arith.constant 2.560000e+02 : f32
    %4 = vector.broadcast %cst_1 : f32 to vector<8x1xf32>
    %5 = arith.divf %3, %4 : vector<8x1xf32>
    %cst_2 = arith.constant 9.99999993E-9 : f32
    %6 = vector.broadcast %cst_2 : f32 to vector<8x1xf32>
    %7 = arith.addf %5, %6 : vector<8x1xf32>
    %8 = math.rsqrt %7 : vector<8x1xf32>
    %9 = vector.broadcast %8 : vector<8x1xf32> to vector<8x256xf32>
    %10 = arith.mulf %0, %9 : vector<8x256xf32>
    %c0_3 = arith.constant 0 : index
    %c0_4 = arith.constant 0 : index
    %c0_5 = arith.constant 0 : index
    %11 = vector.load %arg2[%c0_3, %c0_4, %c0_5] : memref<8x256x256xbf16, #tpu.memory_space<vmem>>, vector<1x256x256xbf16>
    %12 = vector.shape_cast %11 : vector<1x256x256xbf16> to vector<256x256xbf16>
    %13 = arith.truncf %10 : vector<8x256xf32> to vector<8x256xbf16>
    %cst_6 = arith.constant dense<0.000000e+00> : vector<8x256xf32>
    %14 = tpu.matmul %13, %12, %cst_6 {dimension_numbers = #tpu.dot_dimension_numbers<[1], [0], [0], [1], [0, 0, 1, 1], [], []>} : vector<8x256xbf16>, vector<256x256xbf16>, vector<8x256xf32> -> vector<8x256xf32>
    %c0_7 = arith.constant 0 : index
    %c0_8 = arith.constant 0 : index
    %c0_9 = arith.constant 0 : index
    %15 = vector.load %arg3[%c0_7, %c0_8, %c0_9] : memref<8x1x256xf32, #tpu.memory_space<vmem>>, vector<1x1x256xf32>
    %16 = vector.shape_cast %15 : vector<1x1x256xf32> to vector<1x256xf32>
    %17 = vector.broadcast %16 : vector<1x256xf32> to vector<8x256xf32>
    %18 = arith.addf %14, %17 : vector<8x256xf32>
    %cst_10 = arith.constant 0.000000e+00 : f32
    %19 = vector.broadcast %cst_10 : f32 to vector<8x256xf32>
    %20 = arith.maximumf %18, %19 : vector<8x256xf32>
    %c1 = arith.constant 1 : index
    %c0_11 = arith.constant 0 : index
    %c0_12 = arith.constant 0 : index
    %21 = vector.load %arg2[%c1, %c0_11, %c0_12] : memref<8x256x256xbf16, #tpu.memory_space<vmem>>, vector<1x256x256xbf16>
    %22 = vector.shape_cast %21 : vector<1x256x256xbf16> to vector<256x256xbf16>
    %23 = arith.truncf %20 : vector<8x256xf32> to vector<8x256xbf16>
    %cst_13 = arith.constant dense<0.000000e+00> : vector<8x256xf32>
    %24 = tpu.matmul %23, %22, %cst_13 {dimension_numbers = #tpu.dot_dimension_numbers<[1], [0], [0], [1], [0, 0, 1, 1], [], []>} : vector<8x256xbf16>, vector<256x256xbf16>, vector<8x256xf32> -> vector<8x256xf32>
    %c1_14 = arith.constant 1 : index
    %c0_15 = arith.constant 0 : index
    %c0_16 = arith.constant 0 : index
    %25 = vector.load %arg3[%c1_14, %c0_15, %c0_16] : memref<8x1x256xf32, #tpu.memory_space<vmem>>, vector<1x1x256xf32>
    %26 = vector.shape_cast %25 : vector<1x1x256xf32> to vector<1x256xf32>
    %27 = vector.broadcast %26 : vector<1x256xf32> to vector<8x256xf32>
    %28 = arith.addf %24, %27 : vector<8x256xf32>
    %cst_17 = arith.constant 0.000000e+00 : f32
    %29 = vector.broadcast %cst_17 : f32 to vector<8x256xf32>
    %30 = arith.maximumf %28, %29 : vector<8x256xf32>
    %c2 = arith.constant 2 : index
    %c0_18 = arith.constant 0 : index
    %c0_19 = arith.constant 0 : index
    %31 = vector.load %arg2[%c2, %c0_18, %c0_19] : memref<8x256x256xbf16, #tpu.memory_space<vmem>>, vector<1x256x256xbf16>
    %32 = vector.shape_cast %31 : vector<1x256x256xbf16> to vector<256x256xbf16>
    %33 = arith.truncf %30 : vector<8x256xf32> to vector<8x256xbf16>
    %cst_20 = arith.constant dense<0.000000e+00> : vector<8x256xf32>
    %34 = tpu.matmul %33, %32, %cst_20 {dimension_numbers = #tpu.dot_dimension_numbers<[1], [0], [0], [1], [0, 0, 1, 1], [], []>} : vector<8x256xbf16>, vector<256x256xbf16>, vector<8x256xf32> -> vector<8x256xf32>
    %c2_21 = arith.constant 2 : index
    %c0_22 = arith.constant 0 : index
    %c0_23 = arith.constant 0 : index
    %35 = vector.load %arg3[%c2_21, %c0_22, %c0_23] : memref<8x1x256xf32, #tpu.memory_space<vmem>>, vector<1x1x256xf32>
    %36 = vector.shape_cast %35 : vector<1x1x256xf32> to vector<1x256xf32>
    %37 = vector.broadcast %36 : vector<1x256xf32> to vector<8x256xf32>
    %38 = arith.addf %34, %37 : vector<8x256xf32>
    %cst_24 = arith.constant 0.000000e+00 : f32
    %39 = vector.broadcast %cst_24 : f32 to vector<8x256xf32>
    %40 = arith.maximumf %38, %39 : vector<8x256xf32>
    %c3 = arith.constant 3 : index
    %c0_25 = arith.constant 0 : index
    %c0_26 = arith.constant 0 : index
    %41 = vector.load %arg2[%c3, %c0_25, %c0_26] : memref<8x256x256xbf16, #tpu.memory_space<vmem>>, vector<1x256x256xbf16>
    %42 = vector.shape_cast %41 : vector<1x256x256xbf16> to vector<256x256xbf16>
    %43 = arith.truncf %40 : vector<8x256xf32> to vector<8x256xbf16>
    %cst_27 = arith.constant dense<0.000000e+00> : vector<8x256xf32>
    %44 = tpu.matmul %43, %42, %cst_27 {dimension_numbers = #tpu.dot_dimension_numbers<[1], [0], [0], [1], [0, 0, 1, 1], [], []>} : vector<8x256xbf16>, vector<256x256xbf16>, vector<8x256xf32> -> vector<8x256xf32>
    %c3_28 = arith.constant 3 : index
    %c0_29 = arith.constant 0 : index
    %c0_30 = arith.constant 0 : index
    %45 = vector.load %arg3[%c3_28, %c0_29, %c0_30] : memref<8x1x256xf32, #tpu.memory_space<vmem>>, vector<1x1x256xf32>
    %46 = vector.shape_cast %45 : vector<1x1x256xf32> to vector<1x256xf32>
    %47 = vector.broadcast %46 : vector<1x256xf32> to vector<8x256xf32>
    %48 = arith.addf %44, %47 : vector<8x256xf32>
    %cst_31 = arith.constant 0.000000e+00 : f32
    %49 = vector.broadcast %cst_31 : f32 to vector<8x256xf32>
    %50 = arith.maximumf %48, %49 : vector<8x256xf32>
    %c4 = arith.constant 4 : index
    %c0_32 = arith.constant 0 : index
    %c0_33 = arith.constant 0 : index
    %51 = vector.load %arg2[%c4, %c0_32, %c0_33] : memref<8x256x256xbf16, #tpu.memory_space<vmem>>, vector<1x256x256xbf16>
    %52 = vector.shape_cast %51 : vector<1x256x256xbf16> to vector<256x256xbf16>
    %53 = arith.truncf %50 : vector<8x256xf32> to vector<8x256xbf16>
    %cst_34 = arith.constant dense<0.000000e+00> : vector<8x256xf32>
    %54 = tpu.matmul %53, %52, %cst_34 {dimension_numbers = #tpu.dot_dimension_numbers<[1], [0], [0], [1], [0, 0, 1, 1], [], []>} : vector<8x256xbf16>, vector<256x256xbf16>, vector<8x256xf32> -> vector<8x256xf32>
    %c4_35 = arith.constant 4 : index
    %c0_36 = arith.constant 0 : index
    %c0_37 = arith.constant 0 : index
    %55 = vector.load %arg3[%c4_35, %c0_36, %c0_37] : memref<8x1x256xf32, #tpu.memory_space<vmem>>, vector<1x1x256xf32>
    %56 = vector.shape_cast %55 : vector<1x1x256xf32> to vector<1x256xf32>
    %57 = vector.broadcast %56 : vector<1x256xf32> to vector<8x256xf32>
    %58 = arith.addf %54, %57 : vector<8x256xf32>
    %cst_38 = arith.constant 0.000000e+00 : f32
    %59 = vector.broadcast %cst_38 : f32 to vector<8x256xf32>
    %60 = arith.maximumf %58, %59 : vector<8x256xf32>
    %c5 = arith.constant 5 : index
    %c0_39 = arith.constant 0 : index
    %c0_40 = arith.constant 0 : index
    %61 = vector.load %arg2[%c5, %c0_39, %c0_40] : memref<8x256x256xbf16, #tpu.memory_space<vmem>>, vector<1x256x256xbf16>
    %62 = vector.shape_cast %61 : vector<1x256x256xbf16> to vector<256x256xbf16>
    %63 = arith.truncf %60 : vector<8x256xf32> to vector<8x256xbf16>
    %cst_41 = arith.constant dense<0.000000e+00> : vector<8x256xf32>
    %64 = tpu.matmul %63, %62, %cst_41 {dimension_numbers = #tpu.dot_dimension_numbers<[1], [0], [0], [1], [0, 0, 1, 1], [], []>} : vector<8x256xbf16>, vector<256x256xbf16>, vector<8x256xf32> -> vector<8x256xf32>
    %c5_42 = arith.constant 5 : index
    %c0_43 = arith.constant 0 : index
    %c0_44 = arith.constant 0 : index
    %65 = vector.load %arg3[%c5_42, %c0_43, %c0_44] : memref<8x1x256xf32, #tpu.memory_space<vmem>>, vector<1x1x256xf32>
    %66 = vector.shape_cast %65 : vector<1x1x256xf32> to vector<1x256xf32>
    %67 = vector.broadcast %66 : vector<1x256xf32> to vector<8x256xf32>
    %68 = arith.addf %64, %67 : vector<8x256xf32>
    %cst_45 = arith.constant 0.000000e+00 : f32
    %69 = vector.broadcast %cst_45 : f32 to vector<8x256xf32>
    %70 = arith.maximumf %68, %69 : vector<8x256xf32>
    %c6 = arith.constant 6 : index
    %c0_46 = arith.constant 0 : index
    %c0_47 = arith.constant 0 : index
    %71 = vector.load %arg2[%c6, %c0_46, %c0_47] : memref<8x256x256xbf16, #tpu.memory_space<vmem>>, vector<1x256x256xbf16>
    %72 = vector.shape_cast %71 : vector<1x256x256xbf16> to vector<256x256xbf16>
    %73 = arith.truncf %70 : vector<8x256xf32> to vector<8x256xbf16>
    %cst_48 = arith.constant dense<0.000000e+00> : vector<8x256xf32>
    %74 = tpu.matmul %73, %72, %cst_48 {dimension_numbers = #tpu.dot_dimension_numbers<[1], [0], [0], [1], [0, 0, 1, 1], [], []>} : vector<8x256xbf16>, vector<256x256xbf16>, vector<8x256xf32> -> vector<8x256xf32>
    %c6_49 = arith.constant 6 : index
    %c0_50 = arith.constant 0 : index
    %c0_51 = arith.constant 0 : index
    %75 = vector.load %arg3[%c6_49, %c0_50, %c0_51] : memref<8x1x256xf32, #tpu.memory_space<vmem>>, vector<1x1x256xf32>
    %76 = vector.shape_cast %75 : vector<1x1x256xf32> to vector<1x256xf32>
    %77 = vector.broadcast %76 : vector<1x256xf32> to vector<8x256xf32>
    %78 = arith.addf %74, %77 : vector<8x256xf32>
    %cst_52 = arith.constant 0.000000e+00 : f32
    %79 = vector.broadcast %cst_52 : f32 to vector<8x256xf32>
    %80 = arith.maximumf %78, %79 : vector<8x256xf32>
    %c7 = arith.constant 7 : index
    %c0_53 = arith.constant 0 : index
    %c0_54 = arith.constant 0 : index
    %81 = vector.load %arg2[%c7, %c0_53, %c0_54] : memref<8x256x256xbf16, #tpu.memory_space<vmem>>, vector<1x256x256xbf16>
    %82 = vector.shape_cast %81 : vector<1x256x256xbf16> to vector<256x256xbf16>
    %83 = arith.truncf %80 : vector<8x256xf32> to vector<8x256xbf16>
    %cst_55 = arith.constant dense<0.000000e+00> : vector<8x256xf32>
    %84 = tpu.matmul %83, %82, %cst_55 {dimension_numbers = #tpu.dot_dimension_numbers<[1], [0], [0], [1], [0, 0, 1, 1], [], []>} : vector<8x256xbf16>, vector<256x256xbf16>, vector<8x256xf32> -> vector<8x256xf32>
    %c7_56 = arith.constant 7 : index
    %c0_57 = arith.constant 0 : index
    %c0_58 = arith.constant 0 : index
    %85 = vector.load %arg3[%c7_56, %c0_57, %c0_58] : memref<8x1x256xf32, #tpu.memory_space<vmem>>, vector<1x1x256xf32>
    %86 = vector.shape_cast %85 : vector<1x1x256xf32> to vector<1x256xf32>
    %87 = vector.broadcast %86 : vector<1x256xf32> to vector<8x256xf32>
    %88 = arith.addf %84, %87 : vector<8x256xf32>
    %c0_59 = arith.constant 0 : index
    %c0_60 = arith.constant 0 : index
    %89 = vector.load %arg4[%c0_59, %c0_60] : memref<8x256xf32, #tpu.memory_space<vmem>>, vector<8x256xf32>
    tpu.vector_store %arg4[%c0_59, %c0_60], %88 {strides = array<i32>} : memref<8x256xf32, #tpu.memory_space<vmem>>, vector<8x256xf32>,
    return
  }
  func.func @transform_0(%arg0: i32) -> (i32, i32) {
    %c0_i32 = arith.constant 0 : i32
    %c0_i32_0 = arith.constant 0 : i32
    return %arg0, %c0_i32 : i32, i32
  }
  func.func @transform_1(%arg0: i32) -> (i32, i32, i32) {
    %c0_i32 = arith.constant 0 : i32
    %c0_i32_0 = arith.constant 0 : i32
    %c0_i32_1 = arith.constant 0 : i32
    %c0_i32_2 = arith.constant 0 : i32
    return %c0_i32, %c0_i32_0, %c0_i32_1 : i32, i32, i32
  }
  func.func @transform_2(%arg0: i32) -> (i32, i32, i32) {
    %c0_i32 = arith.constant 0 : i32
    %c0_i32_0 = arith.constant 0 : i32
    %c0_i32_1 = arith.constant 0 : i32
    %c0_i32_2 = arith.constant 0 : i32
    return %c0_i32, %c0_i32_0, %c0_i32_1 : i32, i32, i32
  }
  func.func @transform_3(%arg0: i32) -> (i32, i32) {
    %c0_i32 = arith.constant 0 : i32
    %c0_i32_0 = arith.constant 0 : i32
    return %arg0, %c0_i32 : i32, i32
  }
}

</mosaic_0001>

<llo_original>
// kernel: tpu_custom_call.1
$region0: #{tpu_custom_call.1}
  #allocation0 [shape = 'u32[]', space=smem, size = 0x4, offset = 0x4, fixed_abs, tag = 'smem constant byte address 0x4 - core index']
  #allocation1 [shape = 'u32[72,128]{1,0:T(1,128)}', space=vmem, size = 0x9000, scoped, tag = 'internal scratch']
  %s0 = inlined_call_operand.hbm [shape: f32[8,256], index: 0, kind: input, shape index: {}]
  %s1 = inlined_call_operand.hbm [shape: bf16[8,256,256], index: 1, kind: input, shape index: {}]
  %s2 = inlined_call_operand.hbm [shape: f32[8,1,256], index: 2, kind: input, shape index: {}]
  %s3 = inlined_call_operand.hbm [shape: f32[8,256], index: 3, kind: output, shape index: {}]
  %s4 = sld [smem:[#allocation0]]
  $region34: #{tpu_custom_call.1} parent=0
    _
  %s6 = ssub.s32 1, %s4
  %s7 = scalar_select 0, %s6, %s4
  $region1: #{tpu_custom_call.1} parent=0
    #allocation2 [shape = 'u8[8192]{0}', space=vmem, size = 0x2000, scoped, tag = 'input window, operand 0, single buffered']
    #allocation3 [shape = 's32[1]{0}', space=sflag, size = 0x4, scoped, tag = 'scoped memory for tpu_custom_call.1']
    #allocation4 [shape = 's32[1]{0}', space=sflag, size = 0x4, scoped, tag = 'scoped memory for tpu_custom_call.1']
    #allocation5 [shape = 'u8[1048576]{0}', space=vmem, size = 0x100000, scoped, tag = 'input window, operand 1, single buffered']
    #allocation6 [shape = 's32[1]{0}', space=sflag, size = 0x4, scoped, tag = 'scoped memory for tpu_custom_call.1']
    #allocation7 [shape = 'u8[8192]{0}', space=vmem, size = 0x2000, scoped, tag = 'input window, operand 2, single buffered']
    #allocation8 [shape = 'u8[8192]{0}', space=vmem, size = 0x2000, scoped, tag = 'output window, operand 0, single buffered']
    %8 = vsyncpa [#allocation3], 0
    %9 = vsyncpa [#allocation6], 0
    %10 = vsyncpa [#allocation4], 0
    // Predicated region
    $region2: #{tpu_custom_call.1} parent=1 // pred_check
      _
    $region3: #{tpu_custom_call.1} parent=1 // pred_check_branch
      %12 = sbr.rel (0) target = $region5
    $region4: #{tpu_custom_call.1} parent=1 // pred_region
      %14 = vsyncadd [#allocation3], 0
      %s16 = sshll.u32 %s0, 4
      %s17 = int_to_ptr.hbm [resolvable:$true] %s16
      %s18 = sshll.u32 [#allocation2], 4
      %s19 = int_to_ptr.vmem [resolvable:$true] %s18
      %21 = dma.hbm_to_vmem [thread:$0]  %s17, 256, %s19, [#allocation3]
    $region5: #{tpu_custom_call.1} parent=1 // pred_fallthru
      _
    // Predicated region
    $region6: #{tpu_custom_call.1} parent=1 // pred_check
      _
    $region7: #{tpu_custom_call.1} parent=1 // pred_check_branch
      %23 = sbr.rel (0) target = $region9
    $region8: #{tpu_custom_call.1} parent=1 // pred_region
      %25 = vsyncadd [#allocation6], 0
      %s26 = sshll.u32 %s1, 4
      %s27 = int_to_ptr.hbm [resolvable:$true] %s26
      %s28 = sshll.u32 [#allocation5], 4
      %s29 = int_to_ptr.vmem [resolvable:$true] %s28
      %34 = dma.hbm_to_vmem [thread:$0]  %s27, 32768, %s29, [#allocation6], 128, 128, 8
    $region9: #{tpu_custom_call.1} parent=1 // pred_fallthru
      _
    // Predicated region
    $region10: #{tpu_custom_call.1} parent=1 // pred_check
      _
    $region11: #{tpu_custom_call.1} parent=1 // pred_check_branch
      %36 = sbr.rel (0) target = $region13
    $region12: #{tpu_custom_call.1} parent=1 // pred_region
      %38 = vsyncadd [#allocation6], 0
      %s39 = sshll.u32 %s2, 4
      %s40 = int_to_ptr.hbm [resolvable:$true] %s39
      %s41 = sshll.u32 [#allocation7], 4
      %s42 = int_to_ptr.vmem [resolvable:$true] %s41
      %47 = dma.hbm_to_vmem [thread:$0]  %s40, 256, %s42, [#allocation6], 32, 32, 2
    $region13: #{tpu_custom_call.1} parent=1 // pred_fallthru
      _
    // Predicated region
    $region14: #{tpu_custom_call.1} parent=1 // pred_check
      _
    $region15: #{tpu_custom_call.1} parent=1 // pred_check_branch
      %49 = sbr.rel (0) target = $region17
    $region16: #{tpu_custom_call.1} parent=1 // pred_region
      %51 = dma.done [#allocation3], 256
    $region17: #{tpu_custom_call.1} parent=1 // pred_fallthru
      _
    // Predicated region
    $region18: #{tpu_custom_call.1} parent=1 // pred_check
      _
    $region19: #{tpu_custom_call.1} parent=1 // pred_check_branch
      %53 = sbr.rel (0) target = $region21
    $region20: #{tpu_custom_call.1} parent=1 // pred_region
      %55 = dma.done [#allocation6], 32768
    $region21: #{tpu_custom_call.1} parent=1 // pred_fallthru
      _
    // Predicated region
    $region22: #{tpu_custom_call.1} parent=1 // pred_check
      _
    $region23: #{tpu_custom_call.1} parent=1 // pred_check_branch
      %57 = sbr.rel (0) target = $region25
    $region24: #{tpu_custom_call.1} parent=1 // pred_region
      %59 = dma.done [#allocation6], 256
    $region25: #{tpu_custom_call.1} parent=1 // pred_fallthru
      _
    %v60 = vld [vmem:[#allocation2] sm:$0xff]
    %v61 = vld [vmem:[#allocation2 + $0x8] sm:$0xff]
    %v62 = vmul.f32 %v60, %v60
    %v63 = vmul.f32 %v61, %v61
    %v64 = vadd.f32 %v62, %v63
    %65 = vadd.xlane.f32.xlu0 %v64
    %v66 = vpop.xlane.xlu0 %65
    %v67 = vrcp.pop 256.0
    %v68 = vmul.f32 256.0, %v67
    %v69 = vsub.f32 1.0, %v68
    %v70 = vmul.f32 %v67, %v69
    %v71 = vadd.f32 %v67, %v70
    %vm72 = vweird.f32 %v67
    %v73 = vsel %vm72, %v67, %v71
    %v74 = vmul.f32 %v66, %v73
    %v75 = vadd.f32 %v74, 1e-08
    %v76 = vrsqrt.pop %v75
    %v77 = vmul.f32 %v76, %v75
    %v78 = vmul.f32 %v77, %v76
    %v79 = vmul.f32 0.5, %v78
    %v80 = vsub.f32 1.5, %v79
    %v81 = vmul.f32 %v76, %v80
    %vm82 = vweird.f32 %v75
    %vm83 = vweird.f32 %v76
    %vm84 = vmor %vm82, %vm83
    %v85 = vsel %vm84, %v76, %v81
    %v86 = vmul.f32 %v60, %v85
    %v87 = vmul.f32 %v61, %v85
    %v88 = vld [vmem:[#allocation5] sm:$0xff]
    %v89 = vld [vmem:[#allocation5 + $0x8] sm:$0xff]
    %v90 = vld [vmem:[#allocation5 + $0x10] sm:$0xff]
    %v91 = vld [vmem:[#allocation5 + $0x18] sm:$0xff]
    %v92 = vld [vmem:[#allocation5 + $0x20] sm:$0xff]
    %v93 = vld [vmem:[#allocation5 + $0x28] sm:$0xff]
    %v94 = vld [vmem:[#allocation5 + $0x30] sm:$0xff]
    %v95 = vld [vmem:[#allocation5 + $0x38] sm:$0xff]
    %v96 = vld [vmem:[#allocation5 + $0x40] sm:$0xff]
    %v97 = vld [vmem:[#allocation5 + $0x48] sm:$0xff]
    %v98 = vld [vmem:[#allocation5 + $0x50] sm:$0xff]
    %v99 = vld [vmem:[#allocation5 + $0x58] sm:$0xff]
    %v100 = vld [vmem:[#allocation5 + $0x60] sm:$0xff]
    %v101 = vld [vmem:[#allocation5 + $0x68] sm:$0xff]
    %v102 = vld [vmem:[#allocation5 + $0x70] sm:$0xff]
    %v103 = vld [vmem:[#allocation5 + $0x78] sm:$0xff]
    %v104 = vld [vmem:[#allocation5 + $0x80] sm:$0xff]
    %v105 = vld [vmem:[#allocation5 + $0x88] sm:$0xff]
    %v106 = vld [vmem:[#allocation5 + $0x90] sm:$0xff]
    %v107 = vld [vmem:[#allocation5 + $0x98] sm:$0xff]
    %v108 = vld [vmem:[#allocation5 + $0xa0] sm:$0xff]
    %v109 = vld [vmem:[#allocation5 + $0xa8] sm:$0xff]
    %v110 = vld [vmem:[#allocation5 + $0xb0] sm:$0xff]
    %v111 = vld [vmem:[#allocation5 + $0xb8] sm:$0xff]
    %v112 = vld [vmem:[#allocation5 + $0xc0] sm:$0xff]
    %v113 = vld [vmem:[#allocation5 + $0xc8] sm:$0xff]
    %v114 = vld [vmem:[#allocation5 + $0xd0] sm:$0xff]
    %v115 = vld [vmem:[#allocation5 + $0xd8] sm:$0xff]
    %v116 = vld [vmem:[#allocation5 + $0xe0] sm:$0xff]
    %v117 = vld [vmem:[#allocation5 + $0xe8] sm:$0xff]
    %v118 = vld [vmem:[#allocation5 + $0xf0] sm:$0xff]
    %v119 = vld [vmem:[#allocation5 + $0xf8] sm:$0xff]
    %v120 = vpack.c.bf16 %v86, %v86
    %v121 = vpack.c.bf16 %v87, %v87
    %v122 = vld [vmem:[#allocation7] sm:$0x3]
    %v124 = vperm.slane %v122, 0
    %v125 = vperm.slane %v122, 1
    %v160 = vunpack.c.l.b16 %v88
    %v161 = vunpack.c.h.b16 %v88
    %v162 = vunpack.c.l.b16 %v89
    %v163 = vunpack.c.h.b16 %v89
    %v164 = vunpack.c.l.b16 %v90
    %v165 = vunpack.c.h.b16 %v90
    %v166 = vunpack.c.l.b16 %v91
    %v167 = vunpack.c.h.b16 %v91
    %v168 = vunpack.c.l.b16 %v92
    %v169 = vunpack.c.h.b16 %v92
    %v170 = vunpack.c.l.b16 %v93
    %v171 = vunpack.c.h.b16 %v93
    %v172 = vunpack.c.l.b16 %v94
    %v173 = vunpack.c.h.b16 %v94
    %v174 = vunpack.c.l.b16 %v95
    %v175 = vunpack.c.h.b16 %v95
    %v176 = vunpack.c.l.b16 %v96
    %v177 = vunpack.c.h.b16 %v96
    %v178 = vunpack.c.l.b16 %v97
    %v179 = vunpack.c.h.b16 %v97
    %v180 = vunpack.c.l.b16 %v98
    %v181 = vunpack.c.h.b16 %v98
    %v182 = vunpack.c.l.b16 %v99
    %v183 = vunpack.c.h.b16 %v99
    %v184 = vunpack.c.l.b16 %v100
    %v185 = vunpack.c.h.b16 %v100
    %v186 = vunpack.c.l.b16 %v101
    %v187 = vunpack.c.h.b16 %v101
    %v188 = vunpack.c.l.b16 %v102
    %v189 = vunpack.c.h.b16 %v102
    %v190 = vunpack.c.l.b16 %v103
    %v191 = vunpack.c.h.b16 %v103
    %v192 = vunpack.c.l.b16 %v104
    %v193 = vunpack.c.h.b16 %v104
    %v194 = vunpack.c.l.b16 %v105
    %v195 = vunpack.c.h.b16 %v105
    %v196 = vunpack.c.l.b16 %v106
    %v197 = vunpack.c.h.b16 %v106
    %v198 = vunpack.c.l.b16 %v107
    %v199 = vunpack.c.h.b16 %v107
    %v200 = vunpack.c.l.b16 %v108
    %v201 = vunpack.c.h.b16 %v108
    %v202 = vunpack.c.l.b16 %v109
    %v203 = vunpack.c.h.b16 %v109
    %v204 = vunpack.c.l.b16 %v110
    %v205 = vunpack.c.h.b16 %v110
    %v206 = vunpack.c.l.b16 %v111
    %v207 = vunpack.c.h.b16 %v111
    %v208 = vunpack.c.l.b16 %v112
    %v209 = vunpack.c.h.b16 %v112
    %v210 = vunpack.c.l.b16 %v113
    %v211 = vunpack.c.h.b16 %v113
    %v212 = vunpack.c.l.b16 %v114
    %v213 = vunpack.c.h.b16 %v114
    %v214 = vunpack.c.l.b16 %v115
    %v215 = vunpack.c.h.b16 %v115
    %v216 = vunpack.c.l.b16 %v116
    %v217 = vunpack.c.h.b16 %v116
    %v218 = vunpack.c.l.b16 %v117
    %v219 = vunpack.c.h.b16 %v117
    %v220 = vunpack.c.l.b16 %v118
    %v221 = vunpack.c.h.b16 %v118
    %v222 = vunpack.c.l.b16 %v119
    %v223 = vunpack.c.h.b16 %v119
    %v224 = vpack.c.b16 %v162, %v160
    %v225 = vpack.c.b16 %v163, %v161
    %v226 = vpack.c.b16 %v166, %v164
    %v227 = vpack.c.b16 %v167, %v165
    %v228 = vpack.c.b16 %v170, %v168
    %v229 = vpack.c.b16 %v171, %v169
    %v230 = vpack.c.b16 %v174, %v172
    %v231 = vpack.c.b16 %v175, %v173
    %v232 = vpack.c.b16 %v178, %v176
    %v233 = vpack.c.b16 %v179, %v177
    %v234 = vpack.c.b16 %v182, %v180
    %v235 = vpack.c.b16 %v183, %v181
    %v236 = vpack.c.b16 %v186, %v184
    %v237 = vpack.c.b16 %v187, %v185
    %v238 = vpack.c.b16 %v190, %v188
    %v239 = vpack.c.b16 %v191, %v189
    %v240 = vpack.c.b16 %v194, %v192
    %v241 = vpack.c.b16 %v195, %v193
    %v242 = vpack.c.b16 %v198, %v196
    %v243 = vpack.c.b16 %v199, %v197
    %v244 = vpack.c.b16 %v202, %v200
    %v245 = vpack.c.b16 %v203, %v201
    %v246 = vpack.c.b16 %v206, %v204
    %v247 = vpack.c.b16 %v207, %v205
    %v248 = vpack.c.b16 %v210, %v208
    %v249 = vpack.c.b16 %v211, %v209
    %v250 = vpack.c.b16 %v214, %v212
    %v251 = vpack.c.b16 %v215, %v213
    %v252 = vpack.c.b16 %v218, %v216
    %v253 = vpack.c.b16 %v219, %v217
    %v254 = vpack.c.b16 %v222, %v220
    %v255 = vpack.c.b16 %v223, %v221
    %288 = vmatpush.bf16.msra.mxu0 %v238
    %289 = vmatpush.bf16.msra.mxu0 %v236
    %290 = vmatpush.bf16.msra.mxu0 %v234
    %291 = vmatpush.bf16.msra.mxu0 %v232
    %292 = vmatpush.bf16.msra.mxu0 %v230
    %293 = vmatpush.bf16.msra.mxu0 %v228
    %294 = vmatpush.bf16.msra.mxu0 %v226
    %295 = vmatpush.bf16.msra.mxu0 %v224
    %296 = vmatmul.bf16.gmra.mxu0 %v120
    %v297 = vpop.f32.mrf.mxu0
    %v298 = vadd.f32 %v124, %v297
    %v299 = vpop.f32.mrf.mxu0
    %300 = vdwg.mxu0
    %301 = vmatpush.bf16.msra.mxu0 %v254
    %302 = vmatpush.bf16.msra.mxu0 %v252
    %303 = vmatpush.bf16.msra.mxu0 %v250
    %304 = vmatpush.bf16.msra.mxu0 %v248
    %305 = vmatpush.bf16.msra.mxu0 %v246
    %306 = vmatpush.bf16.msra.mxu0 %v244
    %307 = vmatpush.bf16.msra.mxu0 %v242
    %308 = vmatpush.bf16.msra.mxu0 %v240
    %309 = vmatmul.bf16.gmra.mxu0 %v121
    %v310 = vpop.f32.mrf.mxu0
    %v311 = vadd.f32 %v298, %v310
    %v312 = vpop.f32.mrf.mxu0
    %313 = vdwg.mxu0
    %314 = vmatpush.bf16.msra.mxu0 %v239
    %315 = vmatpush.bf16.msra.mxu0 %v237
    %316 = vmatpush.bf16.msra.mxu0 %v235
    %317 = vmatpush.bf16.msra.mxu0 %v233
    %318 = vmatpush.bf16.msra.mxu0 %v231
    %319 = vmatpush.bf16.msra.mxu0 %v229
    %320 = vmatpush.bf16.msra.mxu0 %v227
    %321 = vmatpush.bf16.msra.mxu0 %v225
    %322 = vmatmul.bf16.gmra.mxu0 %v120
    %v323 = vpop.f32.mrf.mxu0
    %v324 = vadd.f32 %v125, %v323
    %v325 = vpop.f32.mrf.mxu0
    %326 = vdwg.mxu0
    %327 = vmatpush.bf16.msra.mxu0 %v255
    %328 = vmatpush.bf16.msra.mxu0 %v253
    %329 = vmatpush.bf16.msra.mxu0 %v251
    %330 = vmatpush.bf16.msra.mxu0 %v249
    %331 = vmatpush.bf16.msra.mxu0 %v247
    %332 = vmatpush.bf16.msra.mxu0 %v245
    %333 = vmatpush.bf16.msra.mxu0 %v243
    %334 = vmatpush.bf16.msra.mxu0 %v241
    %335 = vmatmul.bf16.gmra.mxu0 %v121
    %v336 = vpop.f32.mrf.mxu0
    %v337 = vadd.f32 %v324, %v336
    %v338 = vpop.f32.mrf.mxu0
    %339 = vdwg.mxu0
    %v340 = vmax.f32 %v311, 0.0
    %v341 = vmax.f32 %v337, 0.0
    %s342 = scalar_lea.vmem [#allocation5], 256
    %v343 = vld [vmem:[%s342] sm:$0xff]
    %v344 = vld [vmem:[%s342 + $0x8] sm:$0xff]
    %v345 = vld [vmem:[%s342 + $0x10] sm:$0xff]
    %v346 = vld [vmem:[%s342 + $0x18] sm:$0xff]
    %v347 = vld [vmem:[%s342 + $0x20] sm:$0xff]
    %v348 = vld [vmem:[%s342 + $0x28] sm:$0xff]
    %v349 = vld [vmem:[%s342 + $0x30] sm:$0xff]
    %v350 = vld [vmem:[%s342 + $0x38] sm:$0xff]
    %v351 = vld [vmem:[%s342 + $0x40] sm:$0xff]
    %v352 = vld [vmem:[%s342 + $0x48] sm:$0xff]
    %v353 = vld [vmem:[%s342 + $0x50] sm:$0xff]
    %v354 = vld [vmem:[%s342 + $0x58] sm:$0xff]
    %v355 = vld [vmem:[%s342 + $0x60] sm:$0xff]
    %v356 = vld [vmem:[%s342 + $0x68] sm:$0xff]
    %v357 = vld [vmem:[%s342 + $0x70] sm:$0xff]
    %v358 = vld [vmem:[%s342 + $0x78] sm:$0xff]
    %v359 = vld [vmem:[%s342 + $0x80] sm:$0xff]
    %v360 = vld [vmem:[%s342 + $0x88] sm:$0xff]
    %v361 = vld [vmem:[%s342 + $0x90] sm:$0xff]
    %v362 = vld [vmem:[%s342 + $0x98] sm:$0xff]
    %v363 = vld [vmem:[%s342 + $0xa0] sm:$0xff]
    %v364 = vld [vmem:[%s342 + $0xa8] sm:$0xff]
    %v365 = vld [vmem:[%s342 + $0xb0] sm:$0xff]
    %v366 = vld [vmem:[%s342 + $0xb8] sm:$0xff]
    %v367 = vld [vmem:[%s342 + $0xc0] sm:$0xff]
    %v368 = vld [vmem:[%s342 + $0xc8] sm:$0xff]
    %v369 = vld [vmem:[%s342 + $0xd0] sm:$0xff]
    %v370 = vld [vmem:[%s342 + $0xd8] sm:$0xff]
    %v371 = vld [vmem:[%s342 + $0xe0] sm:$0xff]
    %v372 = vld [vmem:[%s342 + $0xe8] sm:$0xff]
    %v373 = vld [vmem:[%s342 + $0xf0] sm:$0xff]
    %v374 = vld [vmem:[%s342 + $0xf8] sm:$0xff]
    %v375 = vpack.c.bf16 %v340, %v340
    %v376 = vpack.c.bf16 %v341, %v341
    %s377 = scalar_lea.vmem [#allocation7], 2
    %v378 = vld [vmem:[%s377] sm:$0x3]
    %v380 = vperm.slane %v378, 0
    %v381 = vperm.slane %v378, 1
    %v416 = vunpack.c.l.b16 %v343
    %v417 = vunpack.c.h.b16 %v343
    %v418 = vunpack.c.l.b16 %v344
    %v419 = vunpack.c.h.b16 %v344
    %v420 = vunpack.c.l.b16 %v345
    %v421 = vunpack.c.h.b16 %v345
    %v422 = vunpack.c.l.b16 %v346
    %v423 = vunpack.c.h.b16 %v346
    %v424 = vunpack.c.l.b16 %v347
    %v425 = vunpack.c.h.b16 %v347
    %v426 = vunpack.c.l.b16 %v348
    %v427 = vunpack.c.h.b16 %v348
    %v428 = vunpack.c.l.b16 %v349
    %v429 = vunpack.c.h.b16 %v349
    %v430 = vunpack.c.l.b16 %v350
    %v431 = vunpack.c.h.b16 %v350
    %v432 = vunpack.c.l.b16 %v351
    %v433 = vunpack.c.h.b16 %v351
    %v434 = vunpack.c.l.b16 %v352
    %v435 = vunpack.c.h.b16 %v352
    %v436 = vunpack.c.l.b16 %v353
    %v437 = vunpack.c.h.b16 %v353
    %v438 = vunpack.c.l.b16 %v354
    %v439 = vunpack.c.h.b16 %v354
    %v440 = vunpack.c.l.b16 %v355
    %v441 = vunpack.c.h.b16 %v355
    %v442 = vunpack.c.l.b16 %v356
    %v443 = vunpack.c.h.b16 %v356
    %v444 = vunpack.c.l.b16 %v357
    %v445 = vunpack.c.h.b16 %v357
    %v446 = vunpack.c.l.b16 %v358
    %v447 = vunpack.c.h.b16 %v358
    %v448 = vunpack.c.l.b16 %v359
    %v449 = vunpack.c.h.b16 %v359
    %v450 = vunpack.c.l.b16 %v360
    %v451 = vunpack.c.h.b16 %v360
    %v452 = vunpack.c.l.b16 %v361
    %v453 = vunpack.c.h.b16 %v361
    %v454 = vunpack.c.l.b16 %v362
    %v455 = vunpack.c.h.b16 %v362
    %v456 = vunpack.c.l.b16 %v363
    %v457 = vunpack.c.h.b16 %v363
    %v458 = vunpack.c.l.b16 %v364
    %v459 = vunpack.c.h.b16 %v364
    %v460 = vunpack.c.l.b16 %v365
    %v461 = vunpack.c.h.b16 %v365
    %v462 = vunpack.c.l.b16 %v366
    %v463 = vunpack.c.h.b16 %v366
    %v464 = vunpack.c.l.b16 %v367
    %v465 = vunpack.c.h.b16 %v367
    %v466 = vunpack.c.l.b16 %v368
    %v467 = vunpack.c.h.b16 %v368
    %v468 = vunpack.c.l.b16 %v369
    %v469 = vunpack.c.h.b16 %v369
    %v470 = vunpack.c.l.b16 %v370
    %v471 = vunpack.c.h.b16 %v370
    %v472 = vunpack.c.l.b16 %v371
    %v473 = vunpack.c.h.b16 %v371
    %v474 = vunpack.c.l.b16 %v372
    %v475 = vunpack.c.h.b16 %v372
    %v476 = vunpack.c.l.b16 %v373
    %v477 = vunpack.c.h.b16 %v373
    %v478 = vunpack.c.l.b16 %v374
    %v479 = vunpack.c.h.b16 %v374
    %v480 = vpack.c.b16 %v418, %v416
    %v481 = vpack.c.b16 %v419, %v417
    %v482 = vpack.c.b16 %v422, %v420
    %v483 = vpack.c.b16 %v423, %v421
    %v484 = vpack.c.b16 %v426, %v424
    %v485 = vpack.c.b16 %v427, %v425
    %v486 = vpack.c.b16 %v430, %v428
    %v487 = vpack.c.b16 %v431, %v429
    %v488 = vpack.c.b16 %v434, %v432
    %v489 = vpack.c.b16 %v435, %v433
    %v490 = vpack.c.b16 %v438, %v436
    %v491 = vpack.c.b16 %v439, %v437
    %v492 = vpack.c.b16 %v442, %v440
    %v493 = vpack.c.b16 %v443, %v441
    %v494 = vpack.c.b16 %v446, %v444
    %v495 = vpack.c.b16 %v447, %v445
    %v496 = vpack.c.b16 %v450, %v448
    %v497 = vpack.c.b16 %v451, %v449
    %v498 = vpack.c.b16 %v454, %v452
    %v499 = vpack.c.b16 %v455, %v453
    %v500 = vpack.c.b16 %v458, %v456
    %v501 = vpack.c.b16 %v459, %v457
    %v502 = vpack.c.b16 %v462, %v460
    %v503 = vpack.c.b16 %v463, %v461
    %v504 = vpack.c.b16 %v466, %v464
    %v505 = vpack.c.b16 %v467, %v465
    %v506 = vpack.c.b16 %v470, %v468
    %v507 = vpack.c.b16 %v471, %v469
    %v508 = vpack.c.b16 %v474, %v472
    %v509 = vpack.c.b16 %v475, %v473
    %v510 = vpack.c.b16 %v478, %v476
    %v511 = vpack.c.b16 %v479, %v477
    %544 = vmatpush.bf16.msra.mxu0 %v494
    %545 = vmatpush.bf16.msra.mxu0 %v492
    %546 = vmatpush.bf16.msra.mxu0 %v490
    %547 = vmatpush.bf16.msra.mxu0 %v488
    %548 = vmatpush.bf16.msra.mxu0 %v486
    %549 = vmatpush.bf16.msra.mxu0 %v484
    %550 = vmatpush.bf16.msra.mxu0 %v482
    %551 = vmatpush.bf16.msra.mxu0 %v480
    %552 = vmatmul.bf16.gmra.mxu0 %v375
    %v553 = vpop.f32.mrf.mxu0
    %v554 = vadd.f32 %v380, %v553
    %v555 = vpop.f32.mrf.mxu0
    %556 = vdwg.mxu0
    %557 = vmatpush.bf16.msra.mxu0 %v510
    %558 = vmatpush.bf16.msra.mxu0 %v508
    %559 = vmatpush.bf16.msra.mxu0 %v506
    %560 = vmatpush.bf16.msra.mxu0 %v504
    %561 = vmatpush.bf16.msra.mxu0 %v502
    %562 = vmatpush.bf16.msra.mxu0 %v500
    %563 = vmatpush.bf16.msra.mxu0 %v498
    %564 = vmatpush.bf16.msra.mxu0 %v496
    %565 = vmatmul.bf16.gmra.mxu0 %v376
    %v566 = vpop.f32.mrf.mxu0
    %v567 = vadd.f32 %v554, %v566
    %v568 = vpop.f32.mrf.mxu0
    %569 = vdwg.mxu0
    %570 = vmatpush.bf16.msra.mxu0 %v495
    %571 = vmatpush.bf16.msra.mxu0 %v493
    %572 = vmatpush.bf16.msra.mxu0 %v491
    %573 = vmatpush.bf16.msra.mxu0 %v489
    %574 = vmatpush.bf16.msra.mxu0 %v487
    %575 = vmatpush.bf16.msra.mxu0 %v485
    %576 = vmatpush.bf16.msra.mxu0 %v483
    %577 = vmatpush.bf16.msra.mxu0 %v481
    %578 = vmatmul.bf16.gmra.mxu0 %v375
    %v579 = vpop.f32.mrf.mxu0
    %v580 = vadd.f32 %v381, %v579
    %v581 = vpop.f32.mrf.mxu0
    %582 = vdwg.mxu0
    %583 = vmatpush.bf16.msra.mxu0 %v511
    %584 = vmatpush.bf16.msra.mxu0 %v509
    %585 = vmatpush.bf16.msra.mxu0 %v507
    %586 = vmatpush.bf16.msra.mxu0 %v505
    %587 = vmatpush.bf16.msra.mxu0 %v503
    %588 = vmatpush.bf16.msra.mxu0 %v501
    %589 = vmatpush.bf16.msra.mxu0 %v499
    %590 = vmatpush.bf16.msra.mxu0 %v497
    %591 = vmatmul.bf16.gmra.mxu0 %v376
    %v592 = vpop.f32.mrf.mxu0
    %v593 = vadd.f32 %v580, %v592
    %v594 = vpop.f32.mrf.mxu0
    %595 = vdwg.mxu0
    %v596 = vmax.f32 %v567, 0.0
    %v597 = vmax.f32 %v593, 0.0
    %s598 = scalar_lea.vmem [#allocation5], 512
    %v599 = vld [vmem:[%s598] sm:$0xff]
    %v600 = vld [vmem:[%s598 + $0x8] sm:$0xff]
    %v601 = vld [vmem:[%s598 + $0x10] sm:$0xff]
    %v602 = vld [vmem:[%s598 + $0x18] sm:$0xff]
    %v603 = vld [vmem:[%s598 + $0x20] sm:$0xff]
    %v604 = vld [vmem:[%s598 + $0x28] sm:$0xff]
    %v605 = vld [vmem:[%s598 + $0x30] sm:$0xff]
    %v606 = vld [vmem:[%s598 + $0x38] sm:$0xff]
    %v607 = vld [vmem:[%s598 + $0x40] sm:$0xff]
    %v608 = vld [vmem:[%s598 + $0x48] sm:$0xff]
    %v609 = vld [vmem:[%s598 + $0x50] sm:$0xff]
    %v610 = vld [vmem:[%s598 + $0x58] sm:$0xff]
    %v611 = vld [vmem:[%s598 + $0x60] sm:$0xff]
    %v612 = vld [vmem:[%s598 + $0x68] sm:$0xff]
    %v613 = vld [vmem:[%s598 + $0x70] sm:$0xff]
    %v614 = vld [vmem:[%s598 + $0x78] sm:$0xff]
    %v615 = vld [vmem:[%s598 + $0x80] sm:$0xff]
    %v616 = vld [vmem:[%s598 + $0x88] sm:$0xff]
    %v617 = vld [vmem:[%s598 + $0x90] sm:$0xff]
    %v618 = vld [vmem:[%s598 + $0x98] sm:$0xff]
    %v619 = vld [vmem:[%s598 + $0xa0] sm:$0xff]
    %v620 = vld [vmem:[%s598 + $0xa8] sm:$0xff]
    %v621 = vld [vmem:[%s598 + $0xb0] sm:$0xff]
    %v622 = vld [vmem:[%s598 + $0xb8] sm:$0xff]
    %v623 = vld [vmem:[%s598 + $0xc0] sm:$0xff]
    %v624 = vld [vmem:[%s598 + $0xc8] sm:$0xff]
    %v625 = vld [vmem:[%s598 + $0xd0] sm:$0xff]
    %v626 = vld [vmem:[%s598 + $0xd8] sm:$0xff]
    %v627 = vld [vmem:[%s598 + $0xe0] sm:$0xff]
    %v628 = vld [vmem:[%s598 + $0xe8] sm:$0xff]
    %v629 = vld [vmem:[%s598 + $0xf0] sm:$0xff]
    %v630 = vld [vmem:[%s598 + $0xf8] sm:$0xff]
    %v631 = vpack.c.bf16 %v596, %v596
    %v632 = vpack.c.bf16 %v597, %v597
    %s633 = scalar_lea.vmem [#allocation7], 4
    %v634 = vld [vmem:[%s633] sm:$0x3]
    %v636 = vperm.slane %v634, 0
    %v637 = vperm.slane %v634, 1
    %v672 = vunpack.c.l.b16 %v599
    %v673 = vunpack.c.h.b16 %v599
    %v674 = vunpack.c.l.b16 %v600
    %v675 = vunpack.c.h.b16 %v600
    %v676 = vunpack.c.l.b16 %v601
    %v677 = vunpack.c.h.b16 %v601
    %v678 = vunpack.c.l.b16 %v602
    %v679 = vunpack.c.h.b16 %v602
    %v680 = vunpack.c.l.b16 %v603
    %v681 = vunpack.c.h.b16 %v603
    %v682 = vunpack.c.l.b16 %v604
    %v683 = vunpack.c.h.b16 %v604
    %v684 = vunpack.c.l.b16 %v605
    %v685 = vunpack.c.h.b16 %v605
    %v686 = vunpack.c.l.b16 %v606
    %v687 = vunpack.c.h.b16 %v606
    %v688 = vunpack.c.l.b16 %v607
    %v689 = vunpack.c.h.b16 %v607
    %v690 = vunpack.c.l.b16 %v608
    %v691 = vunpack.c.h.b16 %v608
    %v692 = vunpack.c.l.b16 %v609
    %v693 = vunpack.c.h.b16 %v609
    %v694 = vunpack.c.l.b16 %v610
    %v695 = vunpack.c.h.b16 %v610
    %v696 = vunpack.c.l.b16 %v611
    %v697 = vunpack.c.h.b16 %v611
    %v698 = vunpack.c.l.b16 %v612
    %v699 = vunpack.c.h.b16 %v612
    %v700 = vunpack.c.l.b16 %v613
    %v701 = vunpack.c.h.b16 %v613
    %v702 = vunpack.c.l.b16 %v614
    %v703 = vunpack.c.h.b16 %v614
    %v704 = vunpack.c.l.b16 %v615
    %v705 = vunpack.c.h.b16 %v615
    %v706 = vunpack.c.l.b16 %v616
    %v707 = vunpack.c.h.b16 %v616
    %v708 = vunpack.c.l.b16 %v617
    %v709 = vunpack.c.h.b16 %v617
    %v710 = vunpack.c.l.b16 %v618
    %v711 = vunpack.c.h.b16 %v618
    %v712 = vunpack.c.l.b16 %v619
    %v713 = vunpack.c.h.b16 %v619
    %v714 = vunpack.c.l.b16 %v620
    %v715 = vunpack.c.h.b16 %v620
    %v716 = vunpack.c.l.b16 %v621
    %v717 = vunpack.c.h.b16 %v621
    %v718 = vunpack.c.l.b16 %v622
    %v719 = vunpack.c.h.b16 %v622
    %v720 = vunpack.c.l.b16 %v623
    %v721 = vunpack.c.h.b16 %v623
    %v722 = vunpack.c.l.b16 %v624
    %v723 = vunpack.c.h.b16 %v624
    %v724 = vunpack.c.l.b16 %v625
    %v725 = vunpack.c.h.b16 %v625
    %v726 = vunpack.c.l.b16 %v626
    %v727 = vunpack.c.h.b16 %v626
    %v728 = vunpack.c.l.b16 %v627
    %v729 = vunpack.c.h.b16 %v627
    %v730 = vunpack.c.l.b16 %v628
    %v731 = vunpack.c.h.b16 %v628
    %v732 = vunpack.c.l.b16 %v629
    %v733 = vunpack.c.h.b16 %v629
    %v734 = vunpack.c.l.b16 %v630
    %v735 = vunpack.c.h.b16 %v630
    %v736 = vpack.c.b16 %v674, %v672
    %v737 = vpack.c.b16 %v675, %v673
    %v738 = vpack.c.b16 %v678, %v676
    %v739 = vpack.c.b16 %v679, %v677
    %v740 = vpack.c.b16 %v682, %v680
    %v741 = vpack.c.b16 %v683, %v681
    %v742 = vpack.c.b16 %v686, %v684
    %v743 = vpack.c.b16 %v687, %v685
    %v744 = vpack.c.b16 %v690, %v688
    %v745 = vpack.c.b16 %v691, %v689
    %v746 = vpack.c.b16 %v694, %v692
    %v747 = vpack.c.b16 %v695, %v693
    %v748 = vpack.c.b16 %v698, %v696
    %v749 = vpack.c.b16 %v699, %v697
    %v750 = vpack.c.b16 %v702, %v700
    %v751 = vpack.c.b16 %v703, %v701
    %v752 = vpack.c.b16 %v706, %v704
    %v753 = vpack.c.b16 %v707, %v705
    %v754 = vpack.c.b16 %v710, %v708
    %v755 = vpack.c.b16 %v711, %v709
    %v756 = vpack.c.b16 %v714, %v712
    %v757 = vpack.c.b16 %v715, %v713
    %v758 = vpack.c.b16 %v718, %v716
    %v759 = vpack.c.b16 %v719, %v717
    %v760 = vpack.c.b16 %v722, %v720
    %v761 = vpack.c.b16 %v723, %v721
    %v762 = vpack.c.b16 %v726, %v724
    %v763 = vpack.c.b16 %v727, %v725
    %v764 = vpack.c.b16 %v730, %v728
    %v765 = vpack.c.b16 %v731, %v729
    %v766 = vpack.c.b16 %v734, %v732
    %v767 = vpack.c.b16 %v735, %v733
    %800 = vmatpush.bf16.msra.mxu0 %v750
    %801 = vmatpush.bf16.msra.mxu0 %v748
    %802 = vmatpush.bf16.msra.mxu0 %v746
    %803 = vmatpush.bf16.msra.mxu0 %v744
    %804 = vmatpush.bf16.msra.mxu0 %v742
    %805 = vmatpush.bf16.msra.mxu0 %v740
    %806 = vmatpush.bf16.msra.mxu0 %v738
    %807 = vmatpush.bf16.msra.mxu0 %v736
    %808 = vmatmul.bf16.gmra.mxu0 %v631
    %v809 = vpop.f32.mrf.mxu0
    %v810 = vadd.f32 %v636, %v809
    %v811 = vpop.f32.mrf.mxu0
    %812 = vdwg.mxu0
    %813 = vmatpush.bf16.msra.mxu0 %v766
    %814 = vmatpush.bf16.msra.mxu0 %v764
    %815 = vmatpush.bf16.msra.mxu0 %v762
    %816 = vmatpush.bf16.msra.mxu0 %v760
    %817 = vmatpush.bf16.msra.mxu0 %v758
    %818 = vmatpush.bf16.msra.mxu0 %v756
    %819 = vmatpush.bf16.msra.mxu0 %v754
    %820 = vmatpush.bf16.msra.mxu0 %v752
    %821 = vmatmul.bf16.gmra.mxu0 %v632
    %v822 = vpop.f32.mrf.mxu0
    %v823 = vadd.f32 %v810, %v822
    %v824 = vpop.f32.mrf.mxu0
    %825 = vdwg.mxu0
    %826 = vmatpush.bf16.msra.mxu0 %v751
    %827 = vmatpush.bf16.msra.mxu0 %v749
    %828 = vmatpush.bf16.msra.mxu0 %v747
    %829 = vmatpush.bf16.msra.mxu0 %v745
    %830 = vmatpush.bf16.msra.mxu0 %v743
    %831 = vmatpush.bf16.msra.mxu0 %v741
    %832 = vmatpush.bf16.msra.mxu0 %v739
    %833 = vmatpush.bf16.msra.mxu0 %v737
    %834 = vmatmul.bf16.gmra.mxu0 %v631
    %v835 = vpop.f32.mrf.mxu0
    %v836 = vadd.f32 %v637, %v835
    %v837 = vpop.f32.mrf.mxu0
    %838 = vdwg.mxu0
    %839 = vmatpush.bf16.msra.mxu0 %v767
    %840 = vmatpush.bf16.msra.mxu0 %v765
    %841 = vmatpush.bf16.msra.mxu0 %v763
    %842 = vmatpush.bf16.msra.mxu0 %v761
    %843 = vmatpush.bf16.msra.mxu0 %v759
    %844 = vmatpush.bf16.msra.mxu0 %v757
    %845 = vmatpush.bf16.msra.mxu0 %v755
    %846 = vmatpush.bf16.msra.mxu0 %v753
    %847 = vmatmul.bf16.gmra.mxu0 %v632
    %v848 = vpop.f32.mrf.mxu0
    %v849 = vadd.f32 %v836, %v848
    %v850 = vpop.f32.mrf.mxu0
    %851 = vdwg.mxu0
    %v852 = vmax.f32 %v823, 0.0
    %v853 = vmax.f32 %v849, 0.0
    %s854 = scalar_lea.vmem [#allocation5], 768
    %v855 = vld [vmem:[%s854] sm:$0xff]
    %v856 = vld [vmem:[%s854 + $0x8] sm:$0xff]
    %v857 = vld [vmem:[%s854 + $0x10] sm:$0xff]
    %v858 = vld [vmem:[%s854 + $0x18] sm:$0xff]
    %v859 = vld [vmem:[%s854 + $0x20] sm:$0xff]
    %v860 = vld [vmem:[%s854 + $0x28] sm:$0xff]
    %v861 = vld [vmem:[%s854 + $0x30] sm:$0xff]
    %v862 = vld [vmem:[%s854 + $0x38] sm:$0xff]
    %v863 = vld [vmem:[%s854 + $0x40] sm:$0xff]
    %v864 = vld [vmem:[%s854 + $0x48] sm:$0xff]
    %v865 = vld [vmem:[%s854 + $0x50] sm:$0xff]
    %v866 = vld [vmem:[%s854 + $0x58] sm:$0xff]
    %v867 = vld [vmem:[%s854 + $0x60] sm:$0xff]
    %v868 = vld [vmem:[%s854 + $0x68] sm:$0xff]
    %v869 = vld [vmem:[%s854 + $0x70] sm:$0xff]
    %v870 = vld [vmem:[%s854 + $0x78] sm:$0xff]
    %v871 = vld [vmem:[%s854 + $0x80] sm:$0xff]
    %v872 = vld [vmem:[%s854 + $0x88] sm:$0xff]
    %v873 = vld [vmem:[%s854 + $0x90] sm:$0xff]
    %v874 = vld [vmem:[%s854 + $0x98] sm:$0xff]
    %v875 = vld [vmem:[%s854 + $0xa0] sm:$0xff]
    %v876 = vld [vmem:[%s854 + $0xa8] sm:$0xff]
    %v877 = vld [vmem:[%s854 + $0xb0] sm:$0xff]
    %v878 = vld [vmem:[%s854 + $0xb8] sm:$0xff]
    %v879 = vld [vmem:[%s854 + $0xc0] sm:$0xff]
    %v880 = vld [vmem:[%s854 + $0xc8] sm:$0xff]
    %v881 = vld [vmem:[%s854 + $0xd0] sm:$0xff]
    %v882 = vld [vmem:[%s854 + $0xd8] sm:$0xff]
    %v883 = vld [vmem:[%s854 + $0xe0] sm:$0xff]
    %v884 = vld [vmem:[%s854 + $0xe8] sm:$0xff]
    %v885 = vld [vmem:[%s854 + $0xf0] sm:$0xff]
    %v886 = vld [vmem:[%s854 + $0xf8] sm:$0xff]
    %v887 = vpack.c.bf16 %v852, %v852
    %v888 = vpack.c.bf16 %v853, %v853
    %s889 = scalar_lea.vmem [#allocation7], 6
    %v890 = vld [vmem:[%s889] sm:$0x3]
    %v892 = vperm.slane %v890, 0
    %v893 = vperm.slane %v890, 1
    %v928 = vunpack.c.l.b16 %v855
    %v929 = vunpack.c.h.b16 %v855
    %v930 = vunpack.c.l.b16 %v856
    %v931 = vunpack.c.h.b16 %v856
    %v932 = vunpack.c.l.b16 %v857
    %v933 = vunpack.c.h.b16 %v857
    %v934 = vunpack.c.l.b16 %v858
    %v935 = vunpack.c.h.b16 %v858
    %v936 = vunpack.c.l.b16 %v859
    %v937 = vunpack.c.h.b16 %v859
    %v938 = vunpack.c.l.b16 %v860
    %v939 = vunpack.c.h.b16 %v860
    %v940 = vunpack.c.l.b16 %v861
    %v941 = vunpack.c.h.b16 %v861
    %v942 = vunpack.c.l.b16 %v862
    %v943 = vunpack.c.h.b16 %v862
    %v944 = vunpack.c.l.b16 %v863
    %v945 = vunpack.c.h.b16 %v863
    %v946 = vunpack.c.l.b16 %v864
    %v947 = vunpack.c.h.b16 %v864
    %v948 = vunpack.c.l.b16 %v865
    %v949 = vunpack.c.h.b16 %v865
    %v950 = vunpack.c.l.b16 %v866
    %v951 = vunpack.c.h.b16 %v866
    %v952 = vunpack.c.l.b16 %v867
    %v953 = vunpack.c.h.b16 %v867
    %v954 = vunpack.c.l.b16 %v868
    %v955 = vunpack.c.h.b16 %v868
    %v956 = vunpack.c.l.b16 %v869
    %v957 = vunpack.c.h.b16 %v869
    %v958 = vunpack.c.l.b16 %v870
    %v959 = vunpack.c.h.b16 %v870
    %v960 = vunpack.c.l.b16 %v871
    %v961 = vunpack.c.h.b16 %v871
    %v962 = vunpack.c.l.b16 %v872
    %v963 = vunpack.c.h.b16 %v872
    %v964 = vunpack.c.l.b16 %v873
    %v965 = vunpack.c.h.b16 %v873
    %v966 = vunpack.c.l.b16 %v874
    %v967 = vunpack.c.h.b16 %v874
    %v968 = vunpack.c.l.b16 %v875
    %v969 = vunpack.c.h.b16 %v875
    %v970 = vunpack.c.l.b16 %v876
    %v971 = vunpack.c.h.b16 %v876
    %v972 = vunpack.c.l.b16 %v877
    %v973 = vunpack.c.h.b16 %v877
    %v974 = vunpack.c.l.b16 %v878
    %v975 = vunpack.c.h.b16 %v878
    %v976 = vunpack.c.l.b16 %v879
    %v977 = vunpack.c.h.b16 %v879
    %v978 = vunpack.c.l.b16 %v880
    %v979 = vunpack.c.h.b16 %v880
    %v980 = vunpack.c.l.b16 %v881
    %v981 = vunpack.c.h.b16 %v881
    %v982 = vunpack.c.l.b16 %v882
    %v983 = vunpack.c.h.b16 %v882
    %v984 = vunpack.c.l.b16 %v883
    %v985 = vunpack.c.h.b16 %v883
    %v986 = vunpack.c.l.b16 %v884
    %v987 = vunpack.c.h.b16 %v884
    %v988 = vunpack.c.l.b16 %v885
    %v989 = vunpack.c.h.b16 %v885
    %v990 = vunpack.c.l.b16 %v886
    %v991 = vunpack.c.h.b16 %v886
    %v992 = vpack.c.b16 %v930, %v928
    %v993 = vpack.c.b16 %v931, %v929
    %v994 = vpack.c.b16 %v934, %v932
    %v995 = vpack.c.b16 %v935, %v933
    %v996 = vpack.c.b16 %v938, %v936
    %v997 = vpack.c.b16 %v939, %v937
    %v998 = vpack.c.b16 %v942, %v940
    %v999 = vpack.c.b16 %v943, %v941
    %v1000 = vpack.c.b16 %v946, %v944
    %v1001 = vpack.c.b16 %v947, %v945
    %v1002 = vpack.c.b16 %v950, %v948
    %v1003 = vpack.c.b16 %v951, %v949
    %v1004 = vpack.c.b16 %v954, %v952
    %v1005 = vpack.c.b16 %v955, %v953
    %v1006 = vpack.c.b16 %v958, %v956
    %v1007 = vpack.c.b16 %v959, %v957
    %v1008 = vpack.c.b16 %v962, %v960
    %v1009 = vpack.c.b16 %v963, %v961
    %v1010 = vpack.c.b16 %v966, %v964
    %v1011 = vpack.c.b16 %v967, %v965
    %v1012 = vpack.c.b16 %v970, %v968
    %v1013 = vpack.c.b16 %v971, %v969
    %v1014 = vpack.c.b16 %v974, %v972
    %v1015 = vpack.c.b16 %v975, %v973
    %v1016 = vpack.c.b16 %v978, %v976
    %v1017 = vpack.c.b16 %v979, %v977
    %v1018 = vpack.c.b16 %v982, %v980
    %v1019 = vpack.c.b16 %v983, %v981
    %v1020 = vpack.c.b16 %v986, %v984
    %v1021 = vpack.c.b16 %v987, %v985
    %v1022 = vpack.c.b16 %v990, %v988
    %v1023 = vpack.c.b16 %v991, %v989
    %1056 = vmatpush.bf16.msra.mxu0 %v1006
    %1057 = vmatpush.bf16.msra.mxu0 %v1004
    %1058 = vmatpush.bf16.msra.mxu0 %v1002
    %1059 = vmatpush.bf16.msra.mxu0 %v1000
    %1060 = vmatpush.bf16.msra.mxu0 %v998
    %1061 = vmatpush.bf16.msra.mxu0 %v996
    %1062 = vmatpush.bf16.msra.mxu0 %v994
    %1063 = vmatpush.bf16.msra.mxu0 %v992
    %1064 = vmatmul.bf16.gmra.mxu0 %v887
    %v1065 = vpop.f32.mrf.mxu0
    %v1066 = vadd.f32 %v892, %v1065
    %v1067 = vpop.f32.mrf.mxu0
    %1068 = vdwg.mxu0
    %1069 = vmatpush.bf16.msra.mxu0 %v1022
    %1070 = vmatpush.bf16.msra.mxu0 %v1020
    %1071 = vmatpush.bf16.msra.mxu0 %v1018
    %1072 = vmatpush.bf16.msra.mxu0 %v1016
    %1073 = vmatpush.bf16.msra.mxu0 %v1014
    %1074 = vmatpush.bf16.msra.mxu0 %v1012
    %1075 = vmatpush.bf16.msra.mxu0 %v1010
    %1076 = vmatpush.bf16.msra.mxu0 %v1008
    %1077 = vmatmul.bf16.gmra.mxu0 %v888
    %v1078 = vpop.f32.mrf.mxu0
    %v1079 = vadd.f32 %v1066, %v1078
    %v1080 = vpop.f32.mrf.mxu0
    %1081 = vdwg.mxu0
    %1082 = vmatpush.bf16.msra.mxu0 %v1007
    %1083 = vmatpush.bf16.msra.mxu0 %v1005
    %1084 = vmatpush.bf16.msra.mxu0 %v1003
    %1085 = vmatpush.bf16.msra.mxu0 %v1001
    %1086 = vmatpush.bf16.msra.mxu0 %v999
    %1087 = vmatpush.bf16.msra.mxu0 %v997
    %1088 = vmatpush.bf16.msra.mxu0 %v995
    %1089 = vmatpush.bf16.msra.mxu0 %v993
    %1090 = vmatmul.bf16.gmra.mxu0 %v887
    %v1091 = vpop.f32.mrf.mxu0
    %v1092 = vadd.f32 %v893, %v1091
    %v1093 = vpop.f32.mrf.mxu0
    %1094 = vdwg.mxu0
    %1095 = vmatpush.bf16.msra.mxu0 %v1023
    %1096 = vmatpush.bf16.msra.mxu0 %v1021
    %1097 = vmatpush.bf16.msra.mxu0 %v1019
    %1098 = vmatpush.bf16.msra.mxu0 %v1017
    %1099 = vmatpush.bf16.msra.mxu0 %v1015
    %1100 = vmatpush.bf16.msra.mxu0 %v1013
    %1101 = vmatpush.bf16.msra.mxu0 %v1011
    %1102 = vmatpush.bf16.msra.mxu0 %v1009
    %1103 = vmatmul.bf16.gmra.mxu0 %v888
    %v1104 = vpop.f32.mrf.mxu0
    %v1105 = vadd.f32 %v1092, %v1104
    %v1106 = vpop.f32.mrf.mxu0
    %1107 = vdwg.mxu0
    %v1108 = vmax.f32 %v1079, 0.0
    %v1109 = vmax.f32 %v1105, 0.0
    %s1110 = scalar_lea.vmem [#allocation5], 1024
    %v1111 = vld [vmem:[%s1110] sm:$0xff]
    %v1112 = vld [vmem:[%s1110 + $0x8] sm:$0xff]
    %v1113 = vld [vmem:[%s1110 + $0x10] sm:$0xff]
    %v1114 = vld [vmem:[%s1110 + $0x18] sm:$0xff]
    %v1115 = vld [vmem:[%s1110 + $0x20] sm:$0xff]
    %v1116 = vld [vmem:[%s1110 + $0x28] sm:$0xff]
    %v1117 = vld [vmem:[%s1110 + $0x30] sm:$0xff]
    %v1118 = vld [vmem:[%s1110 + $0x38] sm:$0xff]
    %v1119 = vld [vmem:[%s1110 + $0x40] sm:$0xff]
    %v1120 = vld [vmem:[%s1110 + $0x48] sm:$0xff]
    %v1121 = vld [vmem:[%s1110 + $0x50] sm:$0xff]
    %v1122 = vld [vmem:[%s1110 + $0x58] sm:$0xff]
    %v1123 = vld [vmem:[%s1110 + $0x60] sm:$0xff]
    %v1124 = vld [vmem:[%s1110 + $0x68] sm:$0xff]
    %v1125 = vld [vmem:[%s1110 + $0x70] sm:$0xff]
    %v1126 = vld [vmem:[%s1110 + $0x78] sm:$0xff]
    %v1127 = vld [vmem:[%s1110 + $0x80] sm:$0xff]
    %v1128 = vld [vmem:[%s1110 + $0x88] sm:$0xff]
    %v1129 = vld [vmem:[%s1110 + $0x90] sm:$0xff]
    %v1130 = vld [vmem:[%s1110 + $0x98] sm:$0xff]
    %v1131 = vld [vmem:[%s1110 + $0xa0] sm:$0xff]
    %v1132 = vld [vmem:[%s1110 + $0xa8] sm:$0xff]
    %v1133 = vld [vmem:[%s1110 + $0xb0] sm:$0xff]
    %v1134 = vld [vmem:[%s1110 + $0xb8] sm:$0xff]
    %v1135 = vld [vmem:[%s1110 + $0xc0] sm:$0xff]
    %v1136 = vld [vmem:[%s1110 + $0xc8] sm:$0xff]
    %v1137 = vld [vmem:[%s1110 + $0xd0] sm:$0xff]
    %v1138 = vld [vmem:[%s1110 + $0xd8] sm:$0xff]
    %v1139 = vld [vmem:[%s1110 + $0xe0] sm:$0xff]
    %v1140 = vld [vmem:[%s1110 + $0xe8] sm:$0xff]
    %v1141 = vld [vmem:[%s1110 + $0xf0] sm:$0xff]
    %v1142 = vld [vmem:[%s1110 + $0xf8] sm:$0xff]
    %v1143 = vpack.c.bf16 %v1108, %v1108
    %v1144 = vpack.c.bf16 %v1109, %v1109
    %s1145 = scalar_lea.vmem [#allocation7], 8
    %v1146 = vld [vmem:[%s1145] sm:$0x3]
    %v1148 = vperm.slane %v1146, 0
    %v1149 = vperm.slane %v1146, 1
    %v1184 = vunpack.c.l.b16 %v1111
    %v1185 = vunpack.c.h.b16 %v1111
    %v1186 = vunpack.c.l.b16 %v1112
    %v1187 = vunpack.c.h.b16 %v1112
    %v1188 = vunpack.c.l.b16 %v1113
    %v1189 = vunpack.c.h.b16 %v1113
    %v1190 = vunpack.c.l.b16 %v1114
    %v1191 = vunpack.c.h.b16 %v1114
    %v1192 = vunpack.c.l.b16 %v1115
    %v1193 = vunpack.c.h.b16 %v1115
    %v1194 = vunpack.c.l.b16 %v1116
    %v1195 = vunpack.c.h.b16 %v1116
    %v1196 = vunpack.c.l.b16 %v1117
    %v1197 = vunpack.c.h.b16 %v1117
    %v1198 = vunpack.c.l.b16 %v1118
    %v1199 = vunpack.c.h.b16 %v1118
    %v1200 = vunpack.c.l.b16 %v1119
    %v1201 = vunpack.c.h.b16 %v1119
    %v1202 = vunpack.c.l.b16 %v1120
    %v1203 = vunpack.c.h.b16 %v1120
    %v1204 = vunpack.c.l.b16 %v1121
    %v1205 = vunpack.c.h.b16 %v1121
    %v1206 = vunpack.c.l.b16 %v1122
    %v1207 = vunpack.c.h.b16 %v1122
    %v1208 = vunpack.c.l.b16 %v1123
    %v1209 = vunpack.c.h.b16 %v1123
    %v1210 = vunpack.c.l.b16 %v1124
    %v1211 = vunpack.c.h.b16 %v1124
    %v1212 = vunpack.c.l.b16 %v1125
    %v1213 = vunpack.c.h.b16 %v1125
    %v1214 = vunpack.c.l.b16 %v1126
    %v1215 = vunpack.c.h.b16 %v1126
    %v1216 = vunpack.c.l.b16 %v1127
    %v1217 = vunpack.c.h.b16 %v1127
    %v1218 = vunpack.c.l.b16 %v1128
    %v1219 = vunpack.c.h.b16 %v1128
    %v1220 = vunpack.c.l.b16 %v1129
    %v1221 = vunpack.c.h.b16 %v1129
    %v1222 = vunpack.c.l.b16 %v1130
    %v1223 = vunpack.c.h.b16 %v1130
    %v1224 = vunpack.c.l.b16 %v1131
    %v1225 = vunpack.c.h.b16 %v1131
    %v1226 = vunpack.c.l.b16 %v1132
    %v1227 = vunpack.c.h.b16 %v1132
    %v1228 = vunpack.c.l.b16 %v1133
    %v1229 = vunpack.c.h.b16 %v1133
    %v1230 = vunpack.c.l.b16 %v1134
    %v1231 = vunpack.c.h.b16 %v1134
    %v1232 = vunpack.c.l.b16 %v1135
    %v1233 = vunpack.c.h.b16 %v1135
    %v1234 = vunpack.c.l.b16 %v1136
    %v1235 = vunpack.c.h.b16 %v1136
    %v1236 = vunpack.c.l.b16 %v1137
    %v1237 = vunpack.c.h.b16 %v1137
    %v1238 = vunpack.c.l.b16 %v1138
    %v1239 = vunpack.c.h.b16 %v1138
    %v1240 = vunpack.c.l.b16 %v1139
    %v1241 = vunpack.c.h.b16 %v1139
    %v1242 = vunpack.c.l.b16 %v1140
    %v1243 = vunpack.c.h.b16 %v1140
    %v1244 = vunpack.c.l.b16 %v1141
    %v1245 = vunpack.c.h.b16 %v1141
    %v1246 = vunpack.c.l.b16 %v1142
    %v1247 = vunpack.c.h.b16 %v1142
    %v1248 = vpack.c.b16 %v1186, %v1184
    %v1249 = vpack.c.b16 %v1187, %v1185
    %v1250 = vpack.c.b16 %v1190, %v1188
    %v1251 = vpack.c.b16 %v1191, %v1189
    %v1252 = vpack.c.b16 %v1194, %v1192
    %v1253 = vpack.c.b16 %v1195, %v1193
    %v1254 = vpack.c.b16 %v1198, %v1196
    %v1255 = vpack.c.b16 %v1199, %v1197
    %v1256 = vpack.c.b16 %v1202, %v1200
    %v1257 = vpack.c.b16 %v1203, %v1201
    %v1258 = vpack.c.b16 %v1206, %v1204
    %v1259 = vpack.c.b16 %v1207, %v1205
    %v1260 = vpack.c.b16 %v1210, %v1208
    %v1261 = vpack.c.b16 %v1211, %v1209
    %v1262 = vpack.c.b16 %v1214, %v1212
    %v1263 = vpack.c.b16 %v1215, %v1213
    %v1264 = vpack.c.b16 %v1218, %v1216
    %v1265 = vpack.c.b16 %v1219, %v1217
    %v1266 = vpack.c.b16 %v1222, %v1220
    %v1267 = vpack.c.b16 %v1223, %v1221
    %v1268 = vpack.c.b16 %v1226, %v1224
    %v1269 = vpack.c.b16 %v1227, %v1225
    %v1270 = vpack.c.b16 %v1230, %v1228
    %v1271 = vpack.c.b16 %v1231, %v1229
    %v1272 = vpack.c.b16 %v1234, %v1232
    %v1273 = vpack.c.b16 %v1235, %v1233
    %v1274 = vpack.c.b16 %v1238, %v1236
    %v1275 = vpack.c.b16 %v1239, %v1237
    %v1276 = vpack.c.b16 %v1242, %v1240
    %v1277 = vpack.c.b16 %v1243, %v1241
    %v1278 = vpack.c.b16 %v1246, %v1244
    %v1279 = vpack.c.b16 %v1247, %v1245
    %1312 = vmatpush.bf16.msra.mxu0 %v1262
    %1313 = vmatpush.bf16.msra.mxu0 %v1260
    %1314 = vmatpush.bf16.msra.mxu0 %v1258
    %1315 = vmatpush.bf16.msra.mxu0 %v1256
    %1316 = vmatpush.bf16.msra.mxu0 %v1254
    %1317 = vmatpush.bf16.msra.mxu0 %v1252
    %1318 = vmatpush.bf16.msra.mxu0 %v1250
    %1319 = vmatpush.bf16.msra.mxu0 %v1248
    %1320 = vmatmul.bf16.gmra.mxu0 %v1143
    %v1321 = vpop.f32.mrf.mxu0
    %v1322 = vadd.f32 %v1148, %v1321
    %v1323 = vpop.f32.mrf.mxu0
    %1324 = vdwg.mxu0
    %1325 = vmatpush.bf16.msra.mxu0 %v1278
    %1326 = vmatpush.bf16.msra.mxu0 %v1276
    %1327 = vmatpush.bf16.msra.mxu0 %v1274
    %1328 = vmatpush.bf16.msra.mxu0 %v1272
    %1329 = vmatpush.bf16.msra.mxu0 %v1270
    %1330 = vmatpush.bf16.msra.mxu0 %v1268
    %1331 = vmatpush.bf16.msra.mxu0 %v1266
    %1332 = vmatpush.bf16.msra.mxu0 %v1264
    %1333 = vmatmul.bf16.gmra.mxu0 %v1144
    %v1334 = vpop.f32.mrf.mxu0
    %v1335 = vadd.f32 %v1322, %v1334
    %v1336 = vpop.f32.mrf.mxu0
    %1337 = vdwg.mxu0
    %1338 = vmatpush.bf16.msra.mxu0 %v1263
    %1339 = vmatpush.bf16.msra.mxu0 %v1261
    %1340 = vmatpush.bf16.msra.mxu0 %v1259
    %1341 = vmatpush.bf16.msra.mxu0 %v1257
    %1342 = vmatpush.bf16.msra.mxu0 %v1255
    %1343 = vmatpush.bf16.msra.mxu0 %v1253
    %1344 = vmatpush.bf16.msra.mxu0 %v1251
    %1345 = vmatpush.bf16.msra.mxu0 %v1249
    %1346 = vmatmul.bf16.gmra.mxu0 %v1143
    %v1347 = vpop.f32.mrf.mxu0
    %v1348 = vadd.f32 %v1149, %v1347
    %v1349 = vpop.f32.mrf.mxu0
    %1350 = vdwg.mxu0
    %1351 = vmatpush.bf16.msra.mxu0 %v1279
    %1352 = vmatpush.bf16.msra.mxu0 %v1277
    %1353 = vmatpush.bf16.msra.mxu0 %v1275
    %1354 = vmatpush.bf16.msra.mxu0 %v1273
    %1355 = vmatpush.bf16.msra.mxu0 %v1271
    %1356 = vmatpush.bf16.msra.mxu0 %v1269
    %1357 = vmatpush.bf16.msra.mxu0 %v1267
    %1358 = vmatpush.bf16.msra.mxu0 %v1265
    %1359 = vmatmul.bf16.gmra.mxu0 %v1144
    %v1360 = vpop.f32.mrf.mxu0
    %v1361 = vadd.f32 %v1348, %v1360
    %v1362 = vpop.f32.mrf.mxu0
    %1363 = vdwg.mxu0
    %v1364 = vmax.f32 %v1335, 0.0
    %v1365 = vmax.f32 %v1361, 0.0
    %s1366 = scalar_lea.vmem [#allocation5], 1280
    %v1367 = vld [vmem:[%s1366] sm:$0xff]
    %v1368 = vld [vmem:[%s1366 + $0x8] sm:$0xff]
    %v1369 = vld [vmem:[%s1366 + $0x10] sm:$0xff]
    %v1370 = vld [vmem:[%s1366 + $0x18] sm:$0xff]
    %v1371 = vld [vmem:[%s1366 + $0x20] sm:$0xff]
    %v1372 = vld [vmem:[%s1366 + $0x28] sm:$0xff]
    %v1373 = vld [vmem:[%s1366 + $0x30] sm:$0xff]
    %v1374 = vld [vmem:[%s1366 + $0x38] sm:$0xff]
    %v1375 = vld [vmem:[%s1366 + $0x40] sm:$0xff]
    %v1376 = vld [vmem:[%s1366 + $0x48] sm:$0xff]
    %v1377 = vld [vmem:[%s1366 + $0x50] sm:$0xff]
    %v1378 = vld [vmem:[%s1366 + $0x58] sm:$0xff]
    %v1379 = vld [vmem:[%s1366 + $0x60] sm:$0xff]
    %v1380 = vld [vmem:[%s1366 + $0x68] sm:$0xff]
    %v1381 = vld [vmem:[%s1366 + $0x70] sm:$0xff]
    %v1382 = vld [vmem:[%s1366 + $0x78] sm:$0xff]
    %v1383 = vld [vmem:[%s1366 + $0x80] sm:$0xff]
    %v1384 = vld [vmem:[%s1366 + $0x88] sm:$0xff]
    %v1385 = vld [vmem:[%s1366 + $0x90] sm:$0xff]
    %v1386 = vld [vmem:[%s1366 + $0x98] sm:$0xff]
    %v1387 = vld [vmem:[%s1366 + $0xa0] sm:$0xff]
    %v1388 = vld [vmem:[%s1366 + $0xa8] sm:$0xff]
    %v1389 = vld [vmem:[%s1366 + $0xb0] sm:$0xff]
    %v1390 = vld [vmem:[%s1366 + $0xb8] sm:$0xff]
    %v1391 = vld [vmem:[%s1366 + $0xc0] sm:$0xff]
    %v1392 = vld [vmem:[%s1366 + $0xc8] sm:$0xff]
    %v1393 = vld [vmem:[%s1366 + $0xd0] sm:$0xff]
    %v1394 = vld [vmem:[%s1366 + $0xd8] sm:$0xff]
    %v1395 = vld [vmem:[%s1366 + $0xe0] sm:$0xff]
    %v1396 = vld [vmem:[%s1366 + $0xe8] sm:$0xff]
    %v1397 = vld [vmem:[%s1366 + $0xf0] sm:$0xff]
    %v1398 = vld [vmem:[%s1366 + $0xf8] sm:$0xff]
    %v1399 = vpack.c.bf16 %v1364, %v1364
    %v1400 = vpack.c.bf16 %v1365, %v1365
    %s1401 = scalar_lea.vmem [#allocation7], 10
    %v1402 = vld [vmem:[%s1401] sm:$0x3]
    %v1404 = vperm.slane %v1402, 0
    %v1405 = vperm.slane %v1402, 1
    %v1440 = vunpack.c.l.b16 %v1367
    %v1441 = vunpack.c.h.b16 %v1367
    %v1442 = vunpack.c.l.b16 %v1368
    %v1443 = vunpack.c.h.b16 %v1368
    %v1444 = vunpack.c.l.b16 %v1369
    %v1445 = vunpack.c.h.b16 %v1369
    %v1446 = vunpack.c.l.b16 %v1370
    %v1447 = vunpack.c.h.b16 %v1370
    %v1448 = vunpack.c.l.b16 %v1371
    %v1449 = vunpack.c.h.b16 %v1371
    %v1450 = vunpack.c.l.b16 %v1372
    %v1451 = vunpack.c.h.b16 %v1372
    %v1452 = vunpack.c.l.b16 %v1373
    %v1453 = vunpack.c.h.b16 %v1373
    %v1454 = vunpack.c.l.b16 %v1374
    %v1455 = vunpack.c.h.b16 %v1374
    %v1456 = vunpack.c.l.b16 %v1375
    %v1457 = vunpack.c.h.b16 %v1375
    %v1458 = vunpack.c.l.b16 %v1376
    %v1459 = vunpack.c.h.b16 %v1376
    %v1460 = vunpack.c.l.b16 %v1377
    %v1461 = vunpack.c.h.b16 %v1377
    %v1462 = vunpack.c.l.b16 %v1378
    %v1463 = vunpack.c.h.b16 %v1378
    %v1464 = vunpack.c.l.b16 %v1379
    %v1465 = vunpack.c.h.b16 %v1379
    %v1466 = vunpack.c.l.b16 %v1380
    %v1467 = vunpack.c.h.b16 %v1380
    %v1468 = vunpack.c.l.b16 %v1381
    %v1469 = vunpack.c.h.b16 %v1381
    %v1470 = vunpack.c.l.b16 %v1382
    %v1471 = vunpack.c.h.b16 %v1382
    %v1472 = vunpack.c.l.b16 %v1383
    %v1473 = vunpack.c.h.b16 %v1383
    %v1474 = vunpack.c.l.b16 %v1384
    %v1475 = vunpack.c.h.b16 %v1384
    %v1476 = vunpack.c.l.b16 %v1385
    %v1477 = vunpack.c.h.b16 %v1385
    %v1478 = vunpack.c.l.b16 %v1386
    %v1479 = vunpack.c.h.b16 %v1386
    %v1480 = vunpack.c.l.b16 %v1387
    %v1481 = vunpack.c.h.b16 %v1387
    %v1482 = vunpack.c.l.b16 %v1388
    %v1483 = vunpack.c.h.b16 %v1388
    %v1484 = vunpack.c.l.b16 %v1389
    %v1485 = vunpack.c.h.b16 %v1389
    %v1486 = vunpack.c.l.b16 %v1390
    %v1487 = vunpack.c.h.b16 %v1390
    %v1488 = vunpack.c.l.b16 %v1391
    %v1489 = vunpack.c.h.b16 %v1391
    %v1490 = vunpack.c.l.b16 %v1392
    %v1491 = vunpack.c.h.b16 %v1392
    %v1492 = vunpack.c.l.b16 %v1393
    %v1493 = vunpack.c.h.b16 %v1393
    %v1494 = vunpack.c.l.b16 %v1394
    %v1495 = vunpack.c.h.b16 %v1394
    %v1496 = vunpack.c.l.b16 %v1395
    %v1497 = vunpack.c.h.b16 %v1395
    %v1498 = vunpack.c.l.b16 %v1396
    %v1499 = vunpack.c.h.b16 %v1396
    %v1500 = vunpack.c.l.b16 %v1397
    %v1501 = vunpack.c.h.b16 %v1397
    %v1502 = vunpack.c.l.b16 %v1398
    %v1503 = vunpack.c.h.b16 %v1398
    %v1504 = vpack.c.b16 %v1442, %v1440
    %v1505 = vpack.c.b16 %v1443, %v1441
    %v1506 = vpack.c.b16 %v1446, %v1444
    %v1507 = vpack.c.b16 %v1447, %v1445
    %v1508 = vpack.c.b16 %v1450, %v1448
    %v1509 = vpack.c.b16 %v1451, %v1449
    %v1510 = vpack.c.b16 %v1454, %v1452
    %v1511 = vpack.c.b16 %v1455, %v1453
    %v1512 = vpack.c.b16 %v1458, %v1456
    %v1513 = vpack.c.b16 %v1459, %v1457
    %v1514 = vpack.c.b16 %v1462, %v1460
    %v1515 = vpack.c.b16 %v1463, %v1461
    %v1516 = vpack.c.b16 %v1466, %v1464
    %v1517 = vpack.c.b16 %v1467, %v1465
    %v1518 = vpack.c.b16 %v1470, %v1468
    %v1519 = vpack.c.b16 %v1471, %v1469
    %v1520 = vpack.c.b16 %v1474, %v1472
    %v1521 = vpack.c.b16 %v1475, %v1473
    %v1522 = vpack.c.b16 %v1478, %v1476
    %v1523 = vpack.c.b16 %v1479, %v1477
    %v1524 = vpack.c.b16 %v1482, %v1480
    %v1525 = vpack.c.b16 %v1483, %v1481
    %v1526 = vpack.c.b16 %v1486, %v1484
    %v1527 = vpack.c.b16 %v1487, %v1485
    %v1528 = vpack.c.b16 %v1490, %v1488
    %v1529 = vpack.c.b16 %v1491, %v1489
    %v1530 = vpack.c.b16 %v1494, %v1492
    %v1531 = vpack.c.b16 %v1495, %v1493
    %v1532 = vpack.c.b16 %v1498, %v1496
    %v1533 = vpack.c.b16 %v1499, %v1497
    %v1534 = vpack.c.b16 %v1502, %v1500
    %v1535 = vpack.c.b16 %v1503, %v1501
    %1568 = vmatpush.bf16.msra.mxu0 %v1518
    %1569 = vmatpush.bf16.msra.mxu0 %v1516
    %1570 = vmatpush.bf16.msra.mxu0 %v1514
    %1571 = vmatpush.bf16.msra.mxu0 %v1512
    %1572 = vmatpush.bf16.msra.mxu0 %v1510
    %1573 = vmatpush.bf16.msra.mxu0 %v1508
    %1574 = vmatpush.bf16.msra.mxu0 %v1506
    %1575 = vmatpush.bf16.msra.mxu0 %v1504
    %1576 = vmatmul.bf16.gmra.mxu0 %v1399
    %v1577 = vpop.f32.mrf.mxu0
    %v1578 = vadd.f32 %v1404, %v1577
    %v1579 = vpop.f32.mrf.mxu0
    %1580 = vdwg.mxu0
    %1581 = vmatpush.bf16.msra.mxu0 %v1534
    %1582 = vmatpush.bf16.msra.mxu0 %v1532
    %1583 = vmatpush.bf16.msra.mxu0 %v1530
    %1584 = vmatpush.bf16.msra.mxu0 %v1528
    %1585 = vmatpush.bf16.msra.mxu0 %v1526
    %1586 = vmatpush.bf16.msra.mxu0 %v1524
    %1587 = vmatpush.bf16.msra.mxu0 %v1522
    %1588 = vmatpush.bf16.msra.mxu0 %v1520
    %1589 = vmatmul.bf16.gmra.mxu0 %v1400
    %v1590 = vpop.f32.mrf.mxu0
    %v1591 = vadd.f32 %v1578, %v1590
    %v1592 = vpop.f32.mrf.mxu0
    %1593 = vdwg.mxu0
    %1594 = vmatpush.bf16.msra.mxu0 %v1519
    %1595 = vmatpush.bf16.msra.mxu0 %v1517
    %1596 = vmatpush.bf16.msra.mxu0 %v1515
    %1597 = vmatpush.bf16.msra.mxu0 %v1513
    %1598 = vmatpush.bf16.msra.mxu0 %v1511
    %1599 = vmatpush.bf16.msra.mxu0 %v1509
    %1600 = vmatpush.bf16.msra.mxu0 %v1507
    %1601 = vmatpush.bf16.msra.mxu0 %v1505
    %1602 = vmatmul.bf16.gmra.mxu0 %v1399
    %v1603 = vpop.f32.mrf.mxu0
    %v1604 = vadd.f32 %v1405, %v1603
    %v1605 = vpop.f32.mrf.mxu0
    %1606 = vdwg.mxu0
    %1607 = vmatpush.bf16.msra.mxu0 %v1535
    %1608 = vmatpush.bf16.msra.mxu0 %v1533
    %1609 = vmatpush.bf16.msra.mxu0 %v1531
    %1610 = vmatpush.bf16.msra.mxu0 %v1529
    %1611 = vmatpush.bf16.msra.mxu0 %v1527
    %1612 = vmatpush.bf16.msra.mxu0 %v1525
    %1613 = vmatpush.bf16.msra.mxu0 %v1523
    %1614 = vmatpush.bf16.msra.mxu0 %v1521
    %1615 = vmatmul.bf16.gmra.mxu0 %v1400
    %v1616 = vpop.f32.mrf.mxu0
    %v1617 = vadd.f32 %v1604, %v1616
    %v1618 = vpop.f32.mrf.mxu0
    %1619 = vdwg.mxu0
    %v1620 = vmax.f32 %v1591, 0.0
    %v1621 = vmax.f32 %v1617, 0.0
    %s1622 = scalar_lea.vmem [#allocation5], 1536
    %v1623 = vld [vmem:[%s1622] sm:$0xff]
    %v1624 = vld [vmem:[%s1622 + $0x8] sm:$0xff]
    %v1625 = vld [vmem:[%s1622 + $0x10] sm:$0xff]
    %v1626 = vld [vmem:[%s1622 + $0x18] sm:$0xff]
    %v1627 = vld [vmem:[%s1622 + $0x20] sm:$0xff]
    %v1628 = vld [vmem:[%s1622 + $0x28] sm:$0xff]
    %v1629 = vld [vmem:[%s1622 + $0x30] sm:$0xff]
    %v1630 = vld [vmem:[%s1622 + $0x38] sm:$0xff]
    %v1631 = vld [vmem:[%s1622 + $0x40] sm:$0xff]
    %v1632 = vld [vmem:[%s1622 + $0x48] sm:$0xff]
    %v1633 = vld [vmem:[%s1622 + $0x50] sm:$0xff]
    %v1634 = vld [vmem:[%s1622 + $0x58] sm:$0xff]
    %v1635 = vld [vmem:[%s1622 + $0x60] sm:$0xff]
    %v1636 = vld [vmem:[%s1622 + $0x68] sm:$0xff]
    %v1637 = vld [vmem:[%s1622 + $0x70] sm:$0xff]
    %v1638 = vld [vmem:[%s1622 + $0x78] sm:$0xff]
    %v1639 = vld [vmem:[%s1622 + $0x80] sm:$0xff]
    %v1640 = vld [vmem:[%s1622 + $0x88] sm:$0xff]
    %v1641 = vld [vmem:[%s1622 + $0x90] sm:$0xff]
    %v1642 = vld [vmem:[%s1622 + $0x98] sm:$0xff]
    %v1643 = vld [vmem:[%s1622 + $0xa0] sm:$0xff]
    %v1644 = vld [vmem:[%s1622 + $0xa8] sm:$0xff]
    %v1645 = vld [vmem:[%s1622 + $0xb0] sm:$0xff]
    %v1646 = vld [vmem:[%s1622 + $0xb8] sm:$0xff]
    %v1647 = vld [vmem:[%s1622 + $0xc0] sm:$0xff]
    %v1648 = vld [vmem:[%s1622 + $0xc8] sm:$0xff]
    %v1649 = vld [vmem:[%s1622 + $0xd0] sm:$0xff]
    %v1650 = vld [vmem:[%s1622 + $0xd8] sm:$0xff]
    %v1651 = vld [vmem:[%s1622 + $0xe0] sm:$0xff]
    %v1652 = vld [vmem:[%s1622 + $0xe8] sm:$0xff]
    %v1653 = vld [vmem:[%s1622 + $0xf0] sm:$0xff]
    %v1654 = vld [vmem:[%s1622 + $0xf8] sm:$0xff]
    %v1655 = vpack.c.bf16 %v1620, %v1620
    %v1656 = vpack.c.bf16 %v1621, %v1621
    %s1657 = scalar_lea.vmem [#allocation7], 12
    %v1658 = vld [vmem:[%s1657] sm:$0x3]
    %v1660 = vperm.slane %v1658, 0
    %v1661 = vperm.slane %v1658, 1
    %v1696 = vunpack.c.l.b16 %v1623
    %v1697 = vunpack.c.h.b16 %v1623
    %v1698 = vunpack.c.l.b16 %v1624
    %v1699 = vunpack.c.h.b16 %v1624
    %v1700 = vunpack.c.l.b16 %v1625
    %v1701 = vunpack.c.h.b16 %v1625
    %v1702 = vunpack.c.l.b16 %v1626
    %v1703 = vunpack.c.h.b16 %v1626
    %v1704 = vunpack.c.l.b16 %v1627
    %v1705 = vunpack.c.h.b16 %v1627
    %v1706 = vunpack.c.l.b16 %v1628
    %v1707 = vunpack.c.h.b16 %v1628
    %v1708 = vunpack.c.l.b16 %v1629
    %v1709 = vunpack.c.h.b16 %v1629
    %v1710 = vunpack.c.l.b16 %v1630
    %v1711 = vunpack.c.h.b16 %v1630
    %v1712 = vunpack.c.l.b16 %v1631
    %v1713 = vunpack.c.h.b16 %v1631
    %v1714 = vunpack.c.l.b16 %v1632
    %v1715 = vunpack.c.h.b16 %v1632
    %v1716 = vunpack.c.l.b16 %v1633
    %v1717 = vunpack.c.h.b16 %v1633
    %v1718 = vunpack.c.l.b16 %v1634
    %v1719 = vunpack.c.h.b16 %v1634
    %v1720 = vunpack.c.l.b16 %v1635
    %v1721 = vunpack.c.h.b16 %v1635
    %v1722 = vunpack.c.l.b16 %v1636
    %v1723 = vunpack.c.h.b16 %v1636
    %v1724 = vunpack.c.l.b16 %v1637
    %v1725 = vunpack.c.h.b16 %v1637
    %v1726 = vunpack.c.l.b16 %v1638
    %v1727 = vunpack.c.h.b16 %v1638
    %v1728 = vunpack.c.l.b16 %v1639
    %v1729 = vunpack.c.h.b16 %v1639
    %v1730 = vunpack.c.l.b16 %v1640
    %v1731 = vunpack.c.h.b16 %v1640
    %v1732 = vunpack.c.l.b16 %v1641
    %v1733 = vunpack.c.h.b16 %v1641
    %v1734 = vunpack.c.l.b16 %v1642
    %v1735 = vunpack.c.h.b16 %v1642
    %v1736 = vunpack.c.l.b16 %v1643
    %v1737 = vunpack.c.h.b16 %v1643
    %v1738 = vunpack.c.l.b16 %v1644
    %v1739 = vunpack.c.h.b16 %v1644
    %v1740 = vunpack.c.l.b16 %v1645
    %v1741 = vunpack.c.h.b16 %v1645
    %v1742 = vunpack.c.l.b16 %v1646
    %v1743 = vunpack.c.h.b16 %v1646
    %v1744 = vunpack.c.l.b16 %v1647
    %v1745 = vunpack.c.h.b16 %v1647
    %v1746 = vunpack.c.l.b16 %v1648
    %v1747 = vunpack.c.h.b16 %v1648
    %v1748 = vunpack.c.l.b16 %v1649
    %v1749 = vunpack.c.h.b16 %v1649
    %v1750 = vunpack.c.l.b16 %v1650
    %v1751 = vunpack.c.h.b16 %v1650
    %v1752 = vunpack.c.l.b16 %v1651
    %v1753 = vunpack.c.h.b16 %v1651
    %v1754 = vunpack.c.l.b16 %v1652
    %v1755 = vunpack.c.h.b16 %v1652
    %v1756 = vunpack.c.l.b16 %v1653
    %v1757 = vunpack.c.h.b16 %v1653
    %v1758 = vunpack.c.l.b16 %v1654
    %v1759 = vunpack.c.h.b16 %v1654
    %v1760 = vpack.c.b16 %v1698, %v1696
    %v1761 = vpack.c.b16 %v1699, %v1697
    %v1762 = vpack.c.b16 %v1702, %v1700
    %v1763 = vpack.c.b16 %v1703, %v1701
    %v1764 = vpack.c.b16 %v1706, %v1704
    %v1765 = vpack.c.b16 %v1707, %v1705
    %v1766 = vpack.c.b16 %v1710, %v1708
    %v1767 = vpack.c.b16 %v1711, %v1709
    %v1768 = vpack.c.b16 %v1714, %v1712
    %v1769 = vpack.c.b16 %v1715, %v1713
    %v1770 = vpack.c.b16 %v1718, %v1716
    %v1771 = vpack.c.b16 %v1719, %v1717
    %v1772 = vpack.c.b16 %v1722, %v1720
    %v1773 = vpack.c.b16 %v1723, %v1721
    %v1774 = vpack.c.b16 %v1726, %v1724
    %v1775 = vpack.c.b16 %v1727, %v1725
    %v1776 = vpack.c.b16 %v1730, %v1728
    %v1777 = vpack.c.b16 %v1731, %v1729
    %v1778 = vpack.c.b16 %v1734, %v1732
    %v1779 = vpack.c.b16 %v1735, %v1733
    %v1780 = vpack.c.b16 %v1738, %v1736
    %v1781 = vpack.c.b16 %v1739, %v1737
    %v1782 = vpack.c.b16 %v1742, %v1740
    %v1783 = vpack.c.b16 %v1743, %v1741
    %v1784 = vpack.c.b16 %v1746, %v1744
    %v1785 = vpack.c.b16 %v1747, %v1745
    %v1786 = vpack.c.b16 %v1750, %v1748
    %v1787 = vpack.c.b16 %v1751, %v1749
    %v1788 = vpack.c.b16 %v1754, %v1752
    %v1789 = vpack.c.b16 %v1755, %v1753
    %v1790 = vpack.c.b16 %v1758, %v1756
    %v1791 = vpack.c.b16 %v1759, %v1757
    %1824 = vmatpush.bf16.msra.mxu0 %v1774
    %1825 = vmatpush.bf16.msra.mxu0 %v1772
    %1826 = vmatpush.bf16.msra.mxu0 %v1770
    %1827 = vmatpush.bf16.msra.mxu0 %v1768
    %1828 = vmatpush.bf16.msra.mxu0 %v1766
    %1829 = vmatpush.bf16.msra.mxu0 %v1764
    %1830 = vmatpush.bf16.msra.mxu0 %v1762
    %1831 = vmatpush.bf16.msra.mxu0 %v1760
    %1832 = vmatmul.bf16.gmra.mxu0 %v1655
    %v1833 = vpop.f32.mrf.mxu0
    %v1834 = vadd.f32 %v1660, %v1833
    %v1835 = vpop.f32.mrf.mxu0
    %1836 = vdwg.mxu0
    %1837 = vmatpush.bf16.msra.mxu0 %v1790
    %1838 = vmatpush.bf16.msra.mxu0 %v1788
    %1839 = vmatpush.bf16.msra.mxu0 %v1786
    %1840 = vmatpush.bf16.msra.mxu0 %v1784
    %1841 = vmatpush.bf16.msra.mxu0 %v1782
    %1842 = vmatpush.bf16.msra.mxu0 %v1780
    %1843 = vmatpush.bf16.msra.mxu0 %v1778
    %1844 = vmatpush.bf16.msra.mxu0 %v1776
    %1845 = vmatmul.bf16.gmra.mxu0 %v1656
    %v1846 = vpop.f32.mrf.mxu0
    %v1847 = vadd.f32 %v1834, %v1846
    %v1848 = vpop.f32.mrf.mxu0
    %1849 = vdwg.mxu0
    %1850 = vmatpush.bf16.msra.mxu0 %v1775
    %1851 = vmatpush.bf16.msra.mxu0 %v1773
    %1852 = vmatpush.bf16.msra.mxu0 %v1771
    %1853 = vmatpush.bf16.msra.mxu0 %v1769
    %1854 = vmatpush.bf16.msra.mxu0 %v1767
    %1855 = vmatpush.bf16.msra.mxu0 %v1765
    %1856 = vmatpush.bf16.msra.mxu0 %v1763
    %1857 = vmatpush.bf16.msra.mxu0 %v1761
    %1858 = vmatmul.bf16.gmra.mxu0 %v1655
    %v1859 = vpop.f32.mrf.mxu0
    %v1860 = vadd.f32 %v1661, %v1859
    %v1861 = vpop.f32.mrf.mxu0
    %1862 = vdwg.mxu0
    %1863 = vmatpush.bf16.msra.mxu0 %v1791
    %1864 = vmatpush.bf16.msra.mxu0 %v1789
    %1865 = vmatpush.bf16.msra.mxu0 %v1787
    %1866 = vmatpush.bf16.msra.mxu0 %v1785
    %1867 = vmatpush.bf16.msra.mxu0 %v1783
    %1868 = vmatpush.bf16.msra.mxu0 %v1781
    %1869 = vmatpush.bf16.msra.mxu0 %v1779
    %1870 = vmatpush.bf16.msra.mxu0 %v1777
    %1871 = vmatmul.bf16.gmra.mxu0 %v1656
    %v1872 = vpop.f32.mrf.mxu0
    %v1873 = vadd.f32 %v1860, %v1872
    %v1874 = vpop.f32.mrf.mxu0
    %1875 = vdwg.mxu0
    %v1876 = vmax.f32 %v1847, 0.0
    %v1877 = vmax.f32 %v1873, 0.0
    %s1878 = scalar_lea.vmem [#allocation5], 1792
    %v1879 = vld [vmem:[%s1878] sm:$0xff]
    %v1880 = vld [vmem:[%s1878 + $0x8] sm:$0xff]
    %v1881 = vld [vmem:[%s1878 + $0x10] sm:$0xff]
    %v1882 = vld [vmem:[%s1878 + $0x18] sm:$0xff]
    %v1883 = vld [vmem:[%s1878 + $0x20] sm:$0xff]
    %v1884 = vld [vmem:[%s1878 + $0x28] sm:$0xff]
    %v1885 = vld [vmem:[%s1878 + $0x30] sm:$0xff]
    %v1886 = vld [vmem:[%s1878 + $0x38] sm:$0xff]
    %v1887 = vld [vmem:[%s1878 + $0x40] sm:$0xff]
    %v1888 = vld [vmem:[%s1878 + $0x48] sm:$0xff]
    %v1889 = vld [vmem:[%s1878 + $0x50] sm:$0xff]
    %v1890 = vld [vmem:[%s1878 + $0x58] sm:$0xff]
    %v1891 = vld [vmem:[%s1878 + $0x60] sm:$0xff]
    %v1892 = vld [vmem:[%s1878 + $0x68] sm:$0xff]
    %v1893 = vld [vmem:[%s1878 + $0x70] sm:$0xff]
    %v1894 = vld [vmem:[%s1878 + $0x78] sm:$0xff]
    %v1895 = vld [vmem:[%s1878 + $0x80] sm:$0xff]
    %v1896 = vld [vmem:[%s1878 + $0x88] sm:$0xff]
    %v1897 = vld [vmem:[%s1878 + $0x90] sm:$0xff]
    %v1898 = vld [vmem:[%s1878 + $0x98] sm:$0xff]
    %v1899 = vld [vmem:[%s1878 + $0xa0] sm:$0xff]
    %v1900 = vld [vmem:[%s1878 + $0xa8] sm:$0xff]
    %v1901 = vld [vmem:[%s1878 + $0xb0] sm:$0xff]
    %v1902 = vld [vmem:[%s1878 + $0xb8] sm:$0xff]
    %v1903 = vld [vmem:[%s1878 + $0xc0] sm:$0xff]
    %v1904 = vld [vmem:[%s1878 + $0xc8] sm:$0xff]
    %v1905 = vld [vmem:[%s1878 + $0xd0] sm:$0xff]
    %v1906 = vld [vmem:[%s1878 + $0xd8] sm:$0xff]
    %v1907 = vld [vmem:[%s1878 + $0xe0] sm:$0xff]
    %v1908 = vld [vmem:[%s1878 + $0xe8] sm:$0xff]
    %v1909 = vld [vmem:[%s1878 + $0xf0] sm:$0xff]
    %v1910 = vld [vmem:[%s1878 + $0xf8] sm:$0xff]
    %v1911 = vpack.c.bf16 %v1876, %v1876
    %v1912 = vpack.c.bf16 %v1877, %v1877
    %s1913 = scalar_lea.vmem [#allocation7], 14
    %v1914 = vld [vmem:[%s1913] sm:$0x3]
    %v1916 = vperm.slane %v1914, 0
    %v1917 = vperm.slane %v1914, 1
    %v1952 = vunpack.c.l.b16 %v1879
    %v1953 = vunpack.c.h.b16 %v1879
    %v1954 = vunpack.c.l.b16 %v1880
    %v1955 = vunpack.c.h.b16 %v1880
    %v1956 = vunpack.c.l.b16 %v1881
    %v1957 = vunpack.c.h.b16 %v1881
    %v1958 = vunpack.c.l.b16 %v1882
    %v1959 = vunpack.c.h.b16 %v1882
    %v1960 = vunpack.c.l.b16 %v1883
    %v1961 = vunpack.c.h.b16 %v1883
    %v1962 = vunpack.c.l.b16 %v1884
    %v1963 = vunpack.c.h.b16 %v1884
    %v1964 = vunpack.c.l.b16 %v1885
    %v1965 = vunpack.c.h.b16 %v1885
    %v1966 = vunpack.c.l.b16 %v1886
    %v1967 = vunpack.c.h.b16 %v1886
    %v1968 = vunpack.c.l.b16 %v1887
    %v1969 = vunpack.c.h.b16 %v1887
    %v1970 = vunpack.c.l.b16 %v1888
    %v1971 = vunpack.c.h.b16 %v1888
    %v1972 = vunpack.c.l.b16 %v1889
    %v1973 = vunpack.c.h.b16 %v1889
    %v1974 = vunpack.c.l.b16 %v1890
    %v1975 = vunpack.c.h.b16 %v1890
    %v1976 = vunpack.c.l.b16 %v1891
    %v1977 = vunpack.c.h.b16 %v1891
    %v1978 = vunpack.c.l.b16 %v1892
    %v1979 = vunpack.c.h.b16 %v1892
    %v1980 = vunpack.c.l.b16 %v1893
    %v1981 = vunpack.c.h.b16 %v1893
    %v1982 = vunpack.c.l.b16 %v1894
    %v1983 = vunpack.c.h.b16 %v1894
    %v1984 = vunpack.c.l.b16 %v1895
    %v1985 = vunpack.c.h.b16 %v1895
    %v1986 = vunpack.c.l.b16 %v1896
    %v1987 = vunpack.c.h.b16 %v1896
    %v1988 = vunpack.c.l.b16 %v1897
    %v1989 = vunpack.c.h.b16 %v1897
    %v1990 = vunpack.c.l.b16 %v1898
    %v1991 = vunpack.c.h.b16 %v1898
    %v1992 = vunpack.c.l.b16 %v1899
    %v1993 = vunpack.c.h.b16 %v1899
    %v1994 = vunpack.c.l.b16 %v1900
    %v1995 = vunpack.c.h.b16 %v1900
    %v1996 = vunpack.c.l.b16 %v1901
    %v1997 = vunpack.c.h.b16 %v1901
    %v1998 = vunpack.c.l.b16 %v1902
    %v1999 = vunpack.c.h.b16 %v1902
    %v2000 = vunpack.c.l.b16 %v1903
    %v2001 = vunpack.c.h.b16 %v1903
    %v2002 = vunpack.c.l.b16 %v1904
    %v2003 = vunpack.c.h.b16 %v1904
    %v2004 = vunpack.c.l.b16 %v1905
    %v2005 = vunpack.c.h.b16 %v1905
    %v2006 = vunpack.c.l.b16 %v1906
    %v2007 = vunpack.c.h.b16 %v1906
    %v2008 = vunpack.c.l.b16 %v1907
    %v2009 = vunpack.c.h.b16 %v1907
    %v2010 = vunpack.c.l.b16 %v1908
    %v2011 = vunpack.c.h.b16 %v1908
    %v2012 = vunpack.c.l.b16 %v1909
    %v2013 = vunpack.c.h.b16 %v1909
    %v2014 = vunpack.c.l.b16 %v1910
    %v2015 = vunpack.c.h.b16 %v1910
    %v2016 = vpack.c.b16 %v1954, %v1952
    %v2017 = vpack.c.b16 %v1955, %v1953
    %v2018 = vpack.c.b16 %v1958, %v1956
    %v2019 = vpack.c.b16 %v1959, %v1957
    %v2020 = vpack.c.b16 %v1962, %v1960
    %v2021 = vpack.c.b16 %v1963, %v1961
    %v2022 = vpack.c.b16 %v1966, %v1964
    %v2023 = vpack.c.b16 %v1967, %v1965
    %v2024 = vpack.c.b16 %v1970, %v1968
    %v2025 = vpack.c.b16 %v1971, %v1969
    %v2026 = vpack.c.b16 %v1974, %v1972
    %v2027 = vpack.c.b16 %v1975, %v1973
    %v2028 = vpack.c.b16 %v1978, %v1976
    %v2029 = vpack.c.b16 %v1979, %v1977
    %v2030 = vpack.c.b16 %v1982, %v1980
    %v2031 = vpack.c.b16 %v1983, %v1981
    %v2032 = vpack.c.b16 %v1986, %v1984
    %v2033 = vpack.c.b16 %v1987, %v1985
    %v2034 = vpack.c.b16 %v1990, %v1988
    %v2035 = vpack.c.b16 %v1991, %v1989
    %v2036 = vpack.c.b16 %v1994, %v1992
    %v2037 = vpack.c.b16 %v1995, %v1993
    %v2038 = vpack.c.b16 %v1998, %v1996
    %v2039 = vpack.c.b16 %v1999, %v1997
    %v2040 = vpack.c.b16 %v2002, %v2000
    %v2041 = vpack.c.b16 %v2003, %v2001
    %v2042 = vpack.c.b16 %v2006, %v2004
    %v2043 = vpack.c.b16 %v2007, %v2005
    %v2044 = vpack.c.b16 %v2010, %v2008
    %v2045 = vpack.c.b16 %v2011, %v2009
    %v2046 = vpack.c.b16 %v2014, %v2012
    %v2047 = vpack.c.b16 %v2015, %v2013
    %2080 = vmatpush.bf16.msra.mxu0 %v2030
    %2081 = vmatpush.bf16.msra.mxu0 %v2028
    %2082 = vmatpush.bf16.msra.mxu0 %v2026
    %2083 = vmatpush.bf16.msra.mxu0 %v2024
    %2084 = vmatpush.bf16.msra.mxu0 %v2022
    %2085 = vmatpush.bf16.msra.mxu0 %v2020
    %2086 = vmatpush.bf16.msra.mxu0 %v2018
    %2087 = vmatpush.bf16.msra.mxu0 %v2016
    %2088 = vmatmul.bf16.gmra.mxu0 %v1911
    %v2089 = vpop.f32.mrf.mxu0
    %v2090 = vadd.f32 %v1916, %v2089
    %v2091 = vpop.f32.mrf.mxu0
    %2092 = vdwg.mxu0
    %2093 = vmatpush.bf16.msra.mxu0 %v2046
    %2094 = vmatpush.bf16.msra.mxu0 %v2044
    %2095 = vmatpush.bf16.msra.mxu0 %v2042
    %2096 = vmatpush.bf16.msra.mxu0 %v2040
    %2097 = vmatpush.bf16.msra.mxu0 %v2038
    %2098 = vmatpush.bf16.msra.mxu0 %v2036
    %2099 = vmatpush.bf16.msra.mxu0 %v2034
    %2100 = vmatpush.bf16.msra.mxu0 %v2032
    %2101 = vmatmul.bf16.gmra.mxu0 %v1912
    %v2102 = vpop.f32.mrf.mxu0
    %v2103 = vadd.f32 %v2090, %v2102
    %v2104 = vpop.f32.mrf.mxu0
    %2105 = vdwg.mxu0
    %2106 = vmatpush.bf16.msra.mxu0 %v2031
    %2107 = vmatpush.bf16.msra.mxu0 %v2029
    %2108 = vmatpush.bf16.msra.mxu0 %v2027
    %2109 = vmatpush.bf16.msra.mxu0 %v2025
    %2110 = vmatpush.bf16.msra.mxu0 %v2023
    %2111 = vmatpush.bf16.msra.mxu0 %v2021
    %2112 = vmatpush.bf16.msra.mxu0 %v2019
    %2113 = vmatpush.bf16.msra.mxu0 %v2017
    %2114 = vmatmul.bf16.gmra.mxu0 %v1911
    %v2115 = vpop.f32.mrf.mxu0
    %v2116 = vadd.f32 %v1917, %v2115
    %v2117 = vpop.f32.mrf.mxu0
    %2118 = vdwg.mxu0
    %2119 = vmatpush.bf16.msra.mxu0 %v2047
    %2120 = vmatpush.bf16.msra.mxu0 %v2045
    %2121 = vmatpush.bf16.msra.mxu0 %v2043
    %2122 = vmatpush.bf16.msra.mxu0 %v2041
    %2123 = vmatpush.bf16.msra.mxu0 %v2039
    %2124 = vmatpush.bf16.msra.mxu0 %v2037
    %2125 = vmatpush.bf16.msra.mxu0 %v2035
    %2126 = vmatpush.bf16.msra.mxu0 %v2033
    %2127 = vmatmul.bf16.gmra.mxu0 %v1912
    %v2128 = vpop.f32.mrf.mxu0
    %v2129 = vadd.f32 %v2116, %v2128
    %v2130 = vpop.f32.mrf.mxu0
    %2131 = vdwg.mxu0
    %2132 = vst [vmem:[#allocation8] sm:$0xff] %v2103
    %2133 = vst [vmem:[#allocation8 + $0x8] sm:$0xff] %v2129
    // Predicated region
    $region26: #{tpu_custom_call.1} parent=1 // pred_check
      _
    $region27: #{tpu_custom_call.1} parent=1 // pred_check_branch
      %2135 = sbr.rel (0) target = $region29
    $region28: #{tpu_custom_call.1} parent=1 // pred_region
      %2137 = vsyncadd [#allocation4], 0
      %s2139 = sshll.u32 [#allocation8], 4
      %s2140 = int_to_ptr.vmem [resolvable:$true] %s2139
      %s2141 = sshll.u32 %s3, 4
      %s2142 = int_to_ptr.hbm [resolvable:$true] %s2141
      %2144 = dma.vmem_to_hbm [thread:$0]  %s2140, 256, %s2142, [#allocation4]
    $region29: #{tpu_custom_call.1} parent=1 // pred_fallthru
      _
    // Predicated region
    $region30: #{tpu_custom_call.1} parent=1 // pred_check
      _
    $region31: #{tpu_custom_call.1} parent=1 // pred_check_branch
      %2146 = sbr.rel (0) target = $region33
    $region32: #{tpu_custom_call.1} parent=1 // pred_region
      %2148 = dma.done [#allocation4], 256
    $region33: #{tpu_custom_call.1} parent=1 // pred_fallthru
      _
    %2149 = vsyncpa [#allocation3], 1
    %2150 = vsyncpa [#allocation6], 1
    %2151 = vsyncpa [#allocation4], 1

</llo_original>
